<compile_context>
chip_gen: v5e
topology: v5e:2x2
jax: 0.10.0
libtpu: 0.0.40
codegen_flags: <defaults>
</compile_context>

<pallas_src>
import functools

import jax
import jax.numpy as jnp
from jax.experimental import pallas as pl
from jax.experimental.pallas import tpu as pltpu


# ----------------------------- Pallas kernel --------------------------------
def embed_cvae_kernel(
    x_ref, ids_ref, eps_ref,                   # per-row inputs
    ce_tbl_ref, cd_tbl_ref,                    # [C,H] projected cond tables
    we_ref, be_ref,                            # encoder expr_L (bias=True)
    wml_ref, bml_ref,                          # fused mean|log_var head
    wd_ref,                                    # decoder expr_L (bias=False)
    wr_ref, br_ref,                            # recon_decoder Linear (+ReLU)
    z_ref, stats_ref,                          # outputs: z, (8,2) partial sums
):
    f32 = jnp.float32
    bf16 = jnp.bfloat16
    L = z_ref.shape[-1]
    n_cond, H = ce_tbl_ref.shape

    x = x_ref[...]                             # recon_loss == 'mse' => x_log = x
    ids = ids_ref[...]                         # (tile_n, 1) int32 condition ids

    # CondLayers cond_L terms: exact f32 one-hot accumulate over the C
    # pre-projected rows (equivalent to onehot @ ce_tbl, but on the VPU).
    ce = jnp.zeros((x.shape[0], H), f32)
    cd = jnp.zeros((x.shape[0], H), f32)
    for c in range(n_cond):                    # static, C is tiny (=4)
        sel = (ids == c).astype(f32)           # (tile_n, 1)
        ce = ce + sel * ce_tbl_ref[c:c + 1, :]
        cd = cd + sel * cd_tbl_ref[c:c + 1, :]

    # --- Encoder: CondLayers(D, H, n_cond=E, bias=True) + ReLU ---------------
    h = (jnp.dot(x.astype(bf16), we_ref[...], preferred_element_type=f32)
         + ce + be_ref[...])
    h = jnp.maximum(h, 0.0)

    # --- fused mean / log_var heads (one MXU launch, 2L output lanes) --------
    ml = jnp.dot(h.astype(bf16), wml_ref[...], preferred_element_type=f32) + bml_ref[...]
    mu = ml[:, :L]
    lv = ml[:, L:]

    # --- sampling (reparametrization trick) — elementwise kept in f32 --------
    var = jnp.exp(lv) + 1e-4
    z = mu + jnp.sqrt(var) * eps_ref[...]
    z_ref[...] = z

    # --- Decoder FirstL: CondLayers(L, H, n_cond=E, bias=False) + ReLU -------
    hd = jnp.maximum(
        jnp.dot(z.astype(bf16), wd_ref[...], preferred_element_type=f32) + cd,
        0.0)

    # --- recon_decoder: Linear(H, D) + ReLU ----------------------------------
    recon_x = jnp.maximum(
        jnp.dot(hd.astype(bf16), wr_ref[...], preferred_element_type=f32) + br_ref[...],
        0.0)

    # --- per-tile partial sums: [sum((recon-x)^2), sum(KL)] ------------------
    diff = recon_x - x
    recon_row = jnp.sum(diff * diff, axis=-1, keepdims=True)        # (tile_n,1)
    kl = -0.5 * jnp.log(var) + 0.5 * (var + mu * mu) - 0.5
    kl_row = jnp.sum(kl, axis=-1, keepdims=True)                    # (tile_n,1)
    rows = jnp.concatenate([recon_row, kl_row], axis=-1)            # (tile_n,2)
    partial = jnp.sum(rows, axis=0, keepdims=True)                  # (1,2)
    # Broadcast over 8 sublanes so the output block satisfies the (8,128)
    # tiling rule; the wrapper divides by 8 (exact, power of two).
    stats_ref[...] = jnp.broadcast_to(partial, (8, 2))


# ------------------------- one-time parameter prep ---------------------------
def prepare_params(params):
    """Hoisted out of the per-step jitted forward (runs once)."""
    f32, bf16 = jnp.float32, jnp.bfloat16
    # nn.Embedding(num_conditions, E, max_norm=1): renorm rows whose norm > 1.
    # TODO(synk): PyTorch mutates the table in place at lookup time; here the
    # renorm is applied functionally (forward outputs match).
    tbl = params["emb_table"]
    nrm = jnp.sqrt(jnp.sum(tbl * tbl, axis=-1, keepdims=True))
    tbl = jnp.where(nrm > 1.0, tbl * (1.0 / (nrm + 1e-7)), tbl)
    tbl_b = tbl.astype(bf16)
    return {
        "We": params["We"], "be": params["be"],
        "Wml": jnp.concatenate([params["Wmu"], params["Wlv"]], axis=1),   # [H,2L]
        "bml": jnp.concatenate([params["bmu"], params["blv"]], axis=1),   # [1,2L]
        "Wd": params["Wd"],
        "Wr": params["Wr"], "br": params["br"],
        # CondLayers cond_L: project the C distinct embedding rows once.
        "ce_tbl": jnp.dot(tbl_b, params["Wec"], preferred_element_type=f32),  # [C,H]
        "cd_tbl": jnp.dot(tbl_b, params["Wdc"], preferred_element_type=f32),  # [C,H]
    }


def _auto_tile_n(n_rows):
    """One grid step on single-TC chips (v5e/v6e); >=2 steps per core on
    dual-TC chips (v7x) so per-step input DMA pipelines behind compute."""
    try:
        kind = jax.devices()[0].device_kind.lower()
    except Exception:
        kind = ""
    single_tc = any(t in kind for t in
                    ("v5e", "v5 lite", "v5lite", "v6e", "v6 lite", "v6lite"))
    if single_tc:
        return n_rows
    for g in (4, 2, 1):
        t = n_rows // g
        if n_rows % g == 0 and t > 0 and t % 8 == 0:
            return t
    return n_rows


# ------------------------------ wrapper --------------------------------------
def embed_cvae_forward(x, batch, eps, prep, *, tile_n):
    """Returns (z1, recon_loss, kl_div, mmd_loss) like EmbedCVAE.forward."""
    N, D = x.shape
    H = prep["We"].shape[1]
    L = prep["Wml"].shape[1] // 2
    C = prep["ce_tbl"].shape[0]
    # TODO(synk): pad N to a multiple of tile_n (masking padded rows in the
    # stats) to support arbitrary batch sizes.
    assert N % tile_n == 0 and tile_n % 8 == 0
    grid = N // tile_n
    f32 = jnp.float32

    ids = batch.reshape(N, 1).astype(jnp.int32)      # layout-only

    row = lambda d: pl.BlockSpec((tile_n, d), lambda i: (i, 0))
    inv = lambda r, c: pl.BlockSpec((r, c), lambda i: (0, 0))   # grid-invariant

    flops = 2 * N * (D * H + H * 2 * L + L * H + H * D + C * H)
    transcendentals = 3 * N * L                       # exp, log, sqrt
    bytes_accessed = int(
        N * (D + L + 1) * 4                           # x, eps, ids (f32/i32)
        + 2 * C * H * 4                               # cond tables (f32)
        + (D * H + H * 2 * L + L * H + H * D) * 2     # bf16 weights
        + (H + 2 * L + D) * 4                         # f32 biases
        + N * L * 4 + grid * 8 * 2 * 4                # outputs
    )

    z1, stats = pl.pallas_call(
        embed_cvae_kernel,
        out_shape=(
            jax.ShapeDtypeStruct((N, L), f32),
            jax.ShapeDtypeStruct((grid * 8, 2), f32),
        ),
        grid_spec=pltpu.PrefetchScalarGridSpec(
            num_scalar_prefetch=0,
            grid=(grid,),
            in_specs=[
                row(D), row(1), row(L),               # x, ids, eps
                inv(C, H), inv(C, H),                 # ce_tbl, cd_tbl
                inv(D, H), inv(1, H),                 # We, be
                inv(H, 2 * L), inv(1, 2 * L),         # Wml, bml
                inv(L, H),                            # Wd
                inv(H, D), inv(1, D),                 # Wr, br
            ],
            out_specs=[row(L), pl.BlockSpec((8, 2), lambda i: (i, 0))],
        ),
        compiler_params=pltpu.CompilerParams(
            dimension_semantics=("parallel",)),
        cost_estimate=pl.CostEstimate(
            flops=flops, transcendentals=transcendentals,
            bytes_accessed=bytes_accessed),
    )(
        x, ids, eps,
        prep["ce_tbl"], prep["cd_tbl"],
        prep["We"], prep["be"],
        prep["Wml"], prep["bml"],
        prep["Wd"],
        prep["Wr"], prep["br"],
    )

    # Each tile wrote its partial sums broadcast over 8 sublanes -> /8 exact.
    totals = jnp.sum(stats, axis=0)
    recon_loss = totals[0] / (8.0 * N)
    kl_div = totals[1] / (8.0 * N)
    mmd_loss = jnp.float32(0.0)                       # use_mmd = False
    return z1, recon_loss, kl_div, mmd_loss


# ---------------------------- pure-JAX reference ------------------------------
def ref_forward(x, batch, eps, params):
    """Mirrors the kernel's precision scheme (bf16 matmul operands, f32 math)."""
    f32 = jnp.float32
    bf16 = jnp.bfloat16
    tbl = params["emb_table"]
    nrm = jnp.sqrt(jnp.sum(tbl * tbl, axis=-1, keepdims=True))
    tbl = jnp.where(nrm > 1.0, tbl * (1.0 / (nrm + 1e-7)), tbl)
    emb = tbl.astype(bf16)[batch]
    ce = jnp.dot(emb, params["Wec"], preferred_element_type=f32)
    cd = jnp.dot(emb, params["Wdc"], preferred_element_type=f32)

    h = jnp.maximum(
        jnp.dot(x.astype(bf16), params["We"], preferred_element_type=f32)
        + ce + params["be"], 0.0)
    mu = jnp.dot(h.astype(bf16), params["Wmu"], preferred_element_type=f32) + params["bmu"]
    lv = jnp.dot(h.astype(bf16), params["Wlv"], preferred_element_type=f32) + params["blv"]
    var = jnp.exp(lv) + 1e-4
    z = mu + jnp.sqrt(var) * eps
    hd = jnp.maximum(
        jnp.dot(z.astype(bf16), params["Wd"], preferred_element_type=f32) + cd, 0.0)
    recon = jnp.maximum(
        jnp.dot(hd.astype(bf16), params["Wr"], preferred_element_type=f32)
        + params["br"], 0.0)
    recon_loss = jnp.sum((recon - x) ** 2, axis=-1).mean()
    kl = (-0.5 * jnp.log(var) + 0.5 * (var + mu * mu) - 0.5).sum(-1).mean()
    return z, recon_loss, kl, jnp.float32(0.0)


# --------------------------------- main ---------------------------------------
if __name__ == "__main__":
    # Model config (consistent with EmbedCVAE.__init__):
    #   input_dim=256, hidden_layer_sizes=[128], latent_dim=32,
    #   embedding_dim=16, n_conditions=4, recon_loss='mse',
    #   inject_condition=['encoder','decoder'].  Batch N=256.
    N, D, H, L, E, C = 256, 256, 128, 32, 16, 4
    f32, bf16 = jnp.float32, jnp.bfloat16

    key = jax.random.PRNGKey(0)
    ks = jax.random.split(key, 16)

    def init(k, shape, scale, dtype):
        return (jax.random.uniform(k, shape, f32, -1.0, 1.0) * scale).astype(dtype)

    params = {
        "emb_table": jax.random.normal(ks[0], (C, E), f32),
        # Encoder CondLayers(D, H, n_cond=E, bias=True)
        "We":  init(ks[1], (D, H), D ** -0.5, bf16),
        "be":  init(ks[2], (1, H), D ** -0.5, f32),
        "Wec": init(ks[3], (E, H), E ** -0.5, bf16),
        # mean / log_var heads (Linear(H, L) with bias)
        "Wmu": init(ks[4], (H, L), H ** -0.5, bf16),
        "bmu": init(ks[5], (1, L), H ** -0.5, f32),
        "Wlv": init(ks[6], (H, L), H ** -0.5, bf16),
        "blv": init(ks[7], (1, L), H ** -0.5, f32),
        # Decoder CondLayers(L, H, n_cond=E, bias=False)
        "Wd":  init(ks[8], (L, H), L ** -0.5, bf16),
        "Wdc": init(ks[9], (E, H), E ** -0.5, bf16),
        # recon_decoder Linear(H, D) with bias (+ReLU)
        "Wr":  init(ks[10], (H, D), H ** -0.5, bf16),
        "br":  init(ks[11], (1, D), H ** -0.5, f32),
    }

    x = jax.random.uniform(ks[12], (N, D), f32, 0.0, 2.0)       # counts-like
    batch = jax.random.randint(ks[13], (N,), 0, C, jnp.int32)   # condition ids
    eps = jax.random.normal(ks[14], (N, L), f32)                # reparam noise

    # One-time parameter prep (outside the per-step jitted forward).
    prep = prepare_params(params)
    prep = jax.tree_util.tree_map(jax.block_until_ready, prep)

    tile_n = _auto_tile_n(N)
    fwd = jax.jit(functools.partial(embed_cvae_forward, tile_n=tile_n))
    z1, recon_loss, kl_div, mmd_loss = fwd(x, batch, eps, prep)
    jax.block_until_ready((z1, recon_loss, kl_div, mmd_loss))

    z_ref, rl_ref, kl_ref, _ = jax.jit(ref_forward)(x, batch, eps, params)
    assert jnp.allclose(z1, z_ref, rtol=2e-3, atol=2e-3)
    assert jnp.allclose(recon_loss, rl_ref, rtol=2e-3, atol=2e-3)
    assert jnp.allclose(kl_div, kl_ref, rtol=2e-3, atol=2e-3)
    assert float(mmd_loss) == 0.0

    print("KERNEL_OK")
</pallas_src>

<mosaic_0001>
module attributes {stable_mosaic.version = 11 : i64} {
  func.func @embed_cvae_kernel(%arg0: i32, %arg1: memref<64x256xf32, #tpu.memory_space<vmem>>, %arg2: memref<64x1xi32, #tpu.memory_space<vmem>>, %arg3: memref<64x32xf32, #tpu.memory_space<vmem>>, %arg4: memref<4x128xf32, #tpu.memory_space<vmem>>, %arg5: memref<4x128xf32, #tpu.memory_space<vmem>>, %arg6: memref<256x128xbf16, #tpu.memory_space<vmem>>, %arg7: memref<1x128xf32, #tpu.memory_space<vmem>>, %arg8: memref<128x64xbf16, #tpu.memory_space<vmem>>, %arg9: memref<1x64xf32, #tpu.memory_space<vmem>>, %arg10: memref<32x128xbf16, #tpu.memory_space<vmem>>, %arg11: memref<128x256xbf16, #tpu.memory_space<vmem>>, %arg12: memref<1x256xf32, #tpu.memory_space<vmem>>, %arg13: memref<64x32xf32, #tpu.memory_space<vmem>>, %arg14: memref<8x2xf32, #tpu.memory_space<vmem>>) attributes {dimension_semantics = [#tpu.dimension_semantics<parallel>], iteration_bounds = array<i64: 4>, scalar_prefetch = 0 : i64, scratch_operands = 0 : i64, tpu.core_type = #tpu.core_type<tc>, window_params = [{transform_indices = @transform_0, window_bounds = array<i64: 64, 256>}, {transform_indices = @transform_1, window_bounds = array<i64: 64, 1>}, {transform_indices = @transform_2, window_bounds = array<i64: 64, 32>}, {pipeline_mode = #tpu.pipeline_mode<synchronous>, transform_indices = @transform_3, window_bounds = array<i64: 4, 128>}, {pipeline_mode = #tpu.pipeline_mode<synchronous>, transform_indices = @transform_4, window_bounds = array<i64: 4, 128>}, {pipeline_mode = #tpu.pipeline_mode<synchronous>, transform_indices = @transform_5, window_bounds = array<i64: 256, 128>}, {pipeline_mode = #tpu.pipeline_mode<synchronous>, transform_indices = @transform_6, window_bounds = array<i64: 1, 128>}, {pipeline_mode = #tpu.pipeline_mode<synchronous>, transform_indices = @transform_7, window_bounds = array<i64: 128, 64>}, {pipeline_mode = #tpu.pipeline_mode<synchronous>, transform_indices = @transform_8, window_bounds = array<i64: 1, 64>}, {pipeline_mode = #tpu.pipeline_mode<synchronous>, transform_indices = @transform_9, window_bounds = array<i64: 32, 128>}, {pipeline_mode = #tpu.pipeline_mode<synchronous>, transform_indices = @transform_10, window_bounds = array<i64: 128, 256>}, {pipeline_mode = #tpu.pipeline_mode<synchronous>, transform_indices = @transform_11, window_bounds = array<i64: 1, 256>}, {transform_indices = @transform_12, window_bounds = array<i64: 64, 32>}, {transform_indices = @transform_13, window_bounds = array<i64: 8, 2>}]} {
    %c0 = arith.constant 0 : index
    %c0_0 = arith.constant 0 : index
    %0 = vector.load %arg1[%c0, %c0_0] : memref<64x256xf32, #tpu.memory_space<vmem>>, vector<64x256xf32>
    %c0_1 = arith.constant 0 : index
    %c0_2 = arith.constant 0 : index
    %1 = vector.load %arg2[%c0_1, %c0_2] : memref<64x1xi32, #tpu.memory_space<vmem>>, vector<64x1xi32>
    %cst = arith.constant 0.000000e+00 : f32
    %2 = vector.broadcast %cst : f32 to vector<64x128xf32>
    %cst_3 = arith.constant 0.000000e+00 : f32
    %3 = vector.broadcast %cst_3 : f32 to vector<64x128xf32>
    %c0_i32 = arith.constant 0 : i32
    %4 = vector.broadcast %c0_i32 : i32 to vector<64x1xi32>
    %5 = arith.cmpi eq, %1, %4 : vector<64x1xi32>
    %6 = arith.extui %5 : vector<64x1xi1> to vector<64x1xi32>
    %7 = arith.sitofp %6 : vector<64x1xi32> to vector<64x1xf32>
    %c0_4 = arith.constant 0 : index
    %c0_5 = arith.constant 0 : index
    %8 = vector.load %arg4[%c0_4, %c0_5] : memref<4x128xf32, #tpu.memory_space<vmem>>, vector<1x128xf32>
    %9 = vector.broadcast %7 : vector<64x1xf32> to vector<64x128xf32>
    %10 = vector.broadcast %8 : vector<1x128xf32> to vector<64x128xf32>
    %11 = arith.mulf %9, %10 : vector<64x128xf32>
    %12 = arith.addf %2, %11 : vector<64x128xf32>
    %c0_6 = arith.constant 0 : index
    %c0_7 = arith.constant 0 : index
    %13 = vector.load %arg5[%c0_6, %c0_7] : memref<4x128xf32, #tpu.memory_space<vmem>>, vector<1x128xf32>
    %14 = vector.broadcast %7 : vector<64x1xf32> to vector<64x128xf32>
    %15 = vector.broadcast %13 : vector<1x128xf32> to vector<64x128xf32>
    %16 = arith.mulf %14, %15 : vector<64x128xf32>
    %17 = arith.addf %3, %16 : vector<64x128xf32>
    %c1_i32 = arith.constant 1 : i32
    %18 = vector.broadcast %c1_i32 : i32 to vector<64x1xi32>
    %19 = arith.cmpi eq, %1, %18 : vector<64x1xi32>
    %20 = arith.extui %19 : vector<64x1xi1> to vector<64x1xi32>
    %21 = arith.sitofp %20 : vector<64x1xi32> to vector<64x1xf32>
    %c1 = arith.constant 1 : index
    %c0_8 = arith.constant 0 : index
    %22 = vector.load %arg4[%c1, %c0_8] : memref<4x128xf32, #tpu.memory_space<vmem>>, vector<1x128xf32>
    %23 = vector.broadcast %21 : vector<64x1xf32> to vector<64x128xf32>
    %24 = vector.broadcast %22 : vector<1x128xf32> to vector<64x128xf32>
    %25 = arith.mulf %23, %24 : vector<64x128xf32>
    %26 = arith.addf %12, %25 : vector<64x128xf32>
    %c1_9 = arith.constant 1 : index
    %c0_10 = arith.constant 0 : index
    %27 = vector.load %arg5[%c1_9, %c0_10] : memref<4x128xf32, #tpu.memory_space<vmem>>, vector<1x128xf32>
    %28 = vector.broadcast %21 : vector<64x1xf32> to vector<64x128xf32>
    %29 = vector.broadcast %27 : vector<1x128xf32> to vector<64x128xf32>
    %30 = arith.mulf %28, %29 : vector<64x128xf32>
    %31 = arith.addf %17, %30 : vector<64x128xf32>
    %c2_i32 = arith.constant 2 : i32
    %32 = vector.broadcast %c2_i32 : i32 to vector<64x1xi32>
    %33 = arith.cmpi eq, %1, %32 : vector<64x1xi32>
    %34 = arith.extui %33 : vector<64x1xi1> to vector<64x1xi32>
    %35 = arith.sitofp %34 : vector<64x1xi32> to vector<64x1xf32>
    %c2 = arith.constant 2 : index
    %c0_11 = arith.constant 0 : index
    %36 = vector.load %arg4[%c2, %c0_11] : memref<4x128xf32, #tpu.memory_space<vmem>>, vector<1x128xf32>
    %37 = vector.broadcast %35 : vector<64x1xf32> to vector<64x128xf32>
    %38 = vector.broadcast %36 : vector<1x128xf32> to vector<64x128xf32>
    %39 = arith.mulf %37, %38 : vector<64x128xf32>
    %40 = arith.addf %26, %39 : vector<64x128xf32>
    %c2_12 = arith.constant 2 : index
    %c0_13 = arith.constant 0 : index
    %41 = vector.load %arg5[%c2_12, %c0_13] : memref<4x128xf32, #tpu.memory_space<vmem>>, vector<1x128xf32>
    %42 = vector.broadcast %35 : vector<64x1xf32> to vector<64x128xf32>
    %43 = vector.broadcast %41 : vector<1x128xf32> to vector<64x128xf32>
    %44 = arith.mulf %42, %43 : vector<64x128xf32>
    %45 = arith.addf %31, %44 : vector<64x128xf32>
    %c3_i32 = arith.constant 3 : i32
    %46 = vector.broadcast %c3_i32 : i32 to vector<64x1xi32>
    %47 = arith.cmpi eq, %1, %46 : vector<64x1xi32>
    %48 = arith.extui %47 : vector<64x1xi1> to vector<64x1xi32>
    %49 = arith.sitofp %48 : vector<64x1xi32> to vector<64x1xf32>
    %c3 = arith.constant 3 : index
    %c0_14 = arith.constant 0 : index
    %50 = vector.load %arg4[%c3, %c0_14] : memref<4x128xf32, #tpu.memory_space<vmem>>, vector<1x128xf32>
    %51 = vector.broadcast %49 : vector<64x1xf32> to vector<64x128xf32>
    %52 = vector.broadcast %50 : vector<1x128xf32> to vector<64x128xf32>
    %53 = arith.mulf %51, %52 : vector<64x128xf32>
    %54 = arith.addf %40, %53 : vector<64x128xf32>
    %c3_15 = arith.constant 3 : index
    %c0_16 = arith.constant 0 : index
    %55 = vector.load %arg5[%c3_15, %c0_16] : memref<4x128xf32, #tpu.memory_space<vmem>>, vector<1x128xf32>
    %56 = vector.broadcast %49 : vector<64x1xf32> to vector<64x128xf32>
    %57 = vector.broadcast %55 : vector<1x128xf32> to vector<64x128xf32>
    %58 = arith.mulf %56, %57 : vector<64x128xf32>
    %59 = arith.addf %45, %58 : vector<64x128xf32>
    %60 = arith.truncf %0 : vector<64x256xf32> to vector<64x256xbf16>
    %c0_17 = arith.constant 0 : index
    %c0_18 = arith.constant 0 : index
    %61 = vector.load %arg6[%c0_17, %c0_18] : memref<256x128xbf16, #tpu.memory_space<vmem>>, vector<256x128xbf16>
    %cst_19 = arith.constant dense<0.000000e+00> : vector<64x128xf32>
    %62 = tpu.matmul %60, %61, %cst_19 {dimension_numbers = #tpu.dot_dimension_numbers<[1], [0], [0], [1], [0, 0, 1, 1], [], []>} : vector<64x256xbf16>, vector<256x128xbf16>, vector<64x128xf32> -> vector<64x128xf32>
    %63 = arith.addf %62, %54 : vector<64x128xf32>
    %c0_20 = arith.constant 0 : index
    %c0_21 = arith.constant 0 : index
    %64 = vector.load %arg7[%c0_20, %c0_21] : memref<1x128xf32, #tpu.memory_space<vmem>>, vector<1x128xf32>
    %65 = vector.broadcast %64 : vector<1x128xf32> to vector<64x128xf32>
    %66 = arith.addf %63, %65 : vector<64x128xf32>
    %cst_22 = arith.constant 0.000000e+00 : f32
    %67 = vector.broadcast %cst_22 : f32 to vector<64x128xf32>
    %68 = arith.maximumf %66, %67 : vector<64x128xf32>
    %69 = arith.truncf %68 : vector<64x128xf32> to vector<64x128xbf16>
    %c0_23 = arith.constant 0 : index
    %c0_24 = arith.constant 0 : index
    %70 = vector.load %arg8[%c0_23, %c0_24] : memref<128x64xbf16, #tpu.memory_space<vmem>>, vector<128x64xbf16>
    %cst_25 = arith.constant dense<0.000000e+00> : vector<64x64xf32>
    %71 = tpu.matmul %69, %70, %cst_25 {dimension_numbers = #tpu.dot_dimension_numbers<[1], [0], [0], [1], [0, 0, 1, 1], [], []>} : vector<64x128xbf16>, vector<128x64xbf16>, vector<64x64xf32> -> vector<64x64xf32>
    %c0_26 = arith.constant 0 : index
    %c0_27 = arith.constant 0 : index
    %72 = vector.load %arg9[%c0_26, %c0_27] : memref<1x64xf32, #tpu.memory_space<vmem>>, vector<1x64xf32>
    %73 = vector.broadcast %72 : vector<1x64xf32> to vector<64x64xf32>
    %74 = arith.addf %71, %73 : vector<64x64xf32>
    %75 = vector.extract_strided_slice %74 {offsets = [0, 0], sizes = [64, 32], strides = [1, 1]} : vector<64x64xf32> to vector<64x32xf32>
    %76 = vector.extract_strided_slice %74 {offsets = [0, 32], sizes = [64, 32], strides = [1, 1]} : vector<64x64xf32> to vector<64x32xf32>
    %77 = math.exp %76 : vector<64x32xf32>
    %cst_28 = arith.constant 9.99999974E-5 : f32
    %78 = vector.broadcast %cst_28 : f32 to vector<64x32xf32>
    %79 = arith.addf %77, %78 : vector<64x32xf32>
    %80 = math.sqrt %79 : vector<64x32xf32>
    %c0_29 = arith.constant 0 : index
    %c0_30 = arith.constant 0 : index
    %81 = vector.load %arg3[%c0_29, %c0_30] : memref<64x32xf32, #tpu.memory_space<vmem>>, vector<64x32xf32>
    %82 = arith.mulf %80, %81 : vector<64x32xf32>
    %83 = arith.addf %75, %82 : vector<64x32xf32>
    %c0_31 = arith.constant 0 : index
    %c0_32 = arith.constant 0 : index
    %84 = vector.load %arg13[%c0_31, %c0_32] : memref<64x32xf32, #tpu.memory_space<vmem>>, vector<64x32xf32>
    tpu.vector_store %arg13[%c0_31, %c0_32], %83 {strides = array<i32>} : memref<64x32xf32, #tpu.memory_space<vmem>>, vector<64x32xf32>,
    %85 = arith.truncf %83 : vector<64x32xf32> to vector<64x32xbf16>
    %c0_33 = arith.constant 0 : index
    %c0_34 = arith.constant 0 : index
    %86 = vector.load %arg10[%c0_33, %c0_34] : memref<32x128xbf16, #tpu.memory_space<vmem>>, vector<32x128xbf16>
    %cst_35 = arith.constant dense<0.000000e+00> : vector<64x128xf32>
    %87 = tpu.matmul %85, %86, %cst_35 {dimension_numbers = #tpu.dot_dimension_numbers<[1], [0], [0], [1], [0, 0, 1, 1], [], []>} : vector<64x32xbf16>, vector<32x128xbf16>, vector<64x128xf32> -> vector<64x128xf32>
    %88 = arith.addf %87, %59 : vector<64x128xf32>
    %cst_36 = arith.constant 0.000000e+00 : f32
    %89 = vector.broadcast %cst_36 : f32 to vector<64x128xf32>
    %90 = arith.maximumf %88, %89 : vector<64x128xf32>
    %91 = arith.truncf %90 : vector<64x128xf32> to vector<64x128xbf16>
    %c0_37 = arith.constant 0 : index
    %c0_38 = arith.constant 0 : index
    %92 = vector.load %arg11[%c0_37, %c0_38] : memref<128x256xbf16, #tpu.memory_space<vmem>>, vector<128x256xbf16>
    %cst_39 = arith.constant dense<0.000000e+00> : vector<64x256xf32>
    %93 = tpu.matmul %91, %92, %cst_39 {dimension_numbers = #tpu.dot_dimension_numbers<[1], [0], [0], [1], [0, 0, 1, 1], [], []>} : vector<64x128xbf16>, vector<128x256xbf16>, vector<64x256xf32> -> vector<64x256xf32>
    %c0_40 = arith.constant 0 : index
    %c0_41 = arith.constant 0 : index
    %94 = vector.load %arg12[%c0_40, %c0_41] : memref<1x256xf32, #tpu.memory_space<vmem>>, vector<1x256xf32>
    %95 = vector.broadcast %94 : vector<1x256xf32> to vector<64x256xf32>
    %96 = arith.addf %93, %95 : vector<64x256xf32>
    %cst_42 = arith.constant 0.000000e+00 : f32
    %97 = vector.broadcast %cst_42 : f32 to vector<64x256xf32>
    %98 = arith.maximumf %96, %97 : vector<64x256xf32>
    %99 = arith.subf %98, %0 : vector<64x256xf32>
    %100 = arith.mulf %99, %99 : vector<64x256xf32>
    %cst_43 = arith.constant dense<0.000000e+00> : vector<64xf32>
    %101 = vector.multi_reduction <add>, %100, %cst_43 [1] : vector<64x256xf32> to vector<64xf32>
    %102 = vector.shape_cast %101 : vector<64xf32> to vector<64x1xf32>
    %103 = math.log %79 : vector<64x32xf32>
    %cst_44 = arith.constant -5.000000e-01 : f32
    %104 = vector.broadcast %cst_44 : f32 to vector<64x32xf32>
    %105 = arith.mulf %104, %103 : vector<64x32xf32>
    %106 = arith.mulf %75, %75 : vector<64x32xf32>
    %107 = arith.addf %79, %106 : vector<64x32xf32>
    %cst_45 = arith.constant 5.000000e-01 : f32
    %108 = vector.broadcast %cst_45 : f32 to vector<64x32xf32>
    %109 = arith.mulf %108, %107 : vector<64x32xf32>
    %110 = arith.addf %105, %109 : vector<64x32xf32>
    %cst_46 = arith.constant 5.000000e-01 : f32
    %111 = vector.broadcast %cst_46 : f32 to vector<64x32xf32>
    %112 = arith.subf %110, %111 : vector<64x32xf32>
    %cst_47 = arith.constant dense<0.000000e+00> : vector<64xf32>
    %113 = vector.multi_reduction <add>, %112, %cst_47 [1] : vector<64x32xf32> to vector<64xf32>
    %114 = vector.shape_cast %113 : vector<64xf32> to vector<64x1xf32>
    %115 = tpu.concatenate %102, %114 in 1 : vector<64x1xf32>, vector<64x1xf32> -> vector<64x2xf32>
    %cst_48 = arith.constant dense<0.000000e+00> : vector<2xf32>
    %116 = vector.multi_reduction <add>, %115, %cst_48 [0] : vector<64x2xf32> to vector<2xf32>
    %117 = vector.shape_cast %116 : vector<2xf32> to vector<1x2xf32>
    %118 = vector.shape_cast %117 : vector<1x2xf32> to vector<1x2xf32>
    %119 = vector.broadcast %118 : vector<1x2xf32> to vector<8x2xf32>
    %c0_49 = arith.constant 0 : index
    %c0_50 = arith.constant 0 : index
    %120 = vector.load %arg14[%c0_49, %c0_50] : memref<8x2xf32, #tpu.memory_space<vmem>>, vector<8x2xf32>
    tpu.vector_store %arg14[%c0_49, %c0_50], %119 {strides = array<i32>} : memref<8x2xf32, #tpu.memory_space<vmem>>, vector<8x2xf32>,
    return
  }
  func.func @transform_0(%arg0: i32) -> (i32, i32) {
    %c0_i32 = arith.constant 0 : i32
    %c0_i32_0 = arith.constant 0 : i32
    return %arg0, %c0_i32 : i32, i32
  }
  func.func @transform_1(%arg0: i32) -> (i32, i32) {
    %c0_i32 = arith.constant 0 : i32
    %c0_i32_0 = arith.constant 0 : i32
    return %arg0, %c0_i32 : i32, i32
  }
  func.func @transform_2(%arg0: i32) -> (i32, i32) {
    %c0_i32 = arith.constant 0 : i32
    %c0_i32_0 = arith.constant 0 : i32
    return %arg0, %c0_i32 : i32, i32
  }
  func.func @transform_3(%arg0: i32) -> (i32, i32) {
    %c0_i32 = arith.constant 0 : i32
    %c0_i32_0 = arith.constant 0 : i32
    %c0_i32_1 = arith.constant 0 : i32
    return %c0_i32, %c0_i32_0 : i32, i32
  }
  func.func @transform_4(%arg0: i32) -> (i32, i32) {
    %c0_i32 = arith.constant 0 : i32
    %c0_i32_0 = arith.constant 0 : i32
    %c0_i32_1 = arith.constant 0 : i32
    return %c0_i32, %c0_i32_0 : i32, i32
  }
  func.func @transform_5(%arg0: i32) -> (i32, i32) {
    %c0_i32 = arith.constant 0 : i32
    %c0_i32_0 = arith.constant 0 : i32
    %c0_i32_1 = arith.constant 0 : i32
    return %c0_i32, %c0_i32_0 : i32, i32
  }
  func.func @transform_6(%arg0: i32) -> (i32, i32) {
    %c0_i32 = arith.constant 0 : i32
    %c0_i32_0 = arith.constant 0 : i32
    %c0_i32_1 = arith.constant 0 : i32
    return %c0_i32, %c0_i32_0 : i32, i32
  }
  func.func @transform_7(%arg0: i32) -> (i32, i32) {
    %c0_i32 = arith.constant 0 : i32
    %c0_i32_0 = arith.constant 0 : i32
    %c0_i32_1 = arith.constant 0 : i32
    return %c0_i32, %c0_i32_0 : i32, i32
  }
  func.func @transform_8(%arg0: i32) -> (i32, i32) {
    %c0_i32 = arith.constant 0 : i32
    %c0_i32_0 = arith.constant 0 : i32
    %c0_i32_1 = arith.constant 0 : i32
    return %c0_i32, %c0_i32_0 : i32, i32
  }
  func.func @transform_9(%arg0: i32) -> (i32, i32) {
    %c0_i32 = arith.constant 0 : i32
    %c0_i32_0 = arith.constant 0 : i32
    %c0_i32_1 = arith.constant 0 : i32
    return %c0_i32, %c0_i32_0 : i32, i32
  }
  func.func @transform_10(%arg0: i32) -> (i32, i32) {
    %c0_i32 = arith.constant 0 : i32
    %c0_i32_0 = arith.constant 0 : i32
    %c0_i32_1 = arith.constant 0 : i32
    return %c0_i32, %c0_i32_0 : i32, i32
  }
  func.func @transform_11(%arg0: i32) -> (i32, i32) {
    %c0_i32 = arith.constant 0 : i32
    %c0_i32_0 = arith.constant 0 : i32
    %c0_i32_1 = arith.constant 0 : i32
    return %c0_i32, %c0_i32_0 : i32, i32
  }
  func.func @transform_12(%arg0: i32) -> (i32, i32) {
    %c0_i32 = arith.constant 0 : i32
    %c0_i32_0 = arith.constant 0 : i32
    return %arg0, %c0_i32 : i32, i32
  }
  func.func @transform_13(%arg0: i32) -> (i32, i32) {
    %c0_i32 = arith.constant 0 : i32
    %c0_i32_0 = arith.constant 0 : i32
    return %arg0, %c0_i32 : i32, i32
  }
}

</mosaic_0001>

<llo_original>
// kernel: embed_cvae_forward.1
$region0: #{embed_cvae_forward.1}
  #allocation0 [shape = 'u32[]', space=smem, size = 0x4, offset = 0x4, fixed_abs, tag = 'smem constant byte address 0x4 - core index']
  #allocation1 [shape = 'u32[72,128]{1,0:T(1,128)}', space=vmem, size = 0x9000, scoped, tag = 'internal scratch']
  %s0 = inlined_call_operand.vmem [shape: f32[256,256], index: 0, kind: input, shape index: {}]
  %s1 = inlined_call_operand.vmem [shape: s32[256,1], index: 1, kind: input, shape index: {}]
  %s2 = inlined_call_operand.vmem [shape: f32[256,32], index: 2, kind: input, shape index: {}]
  %s3 = inlined_call_operand.hbm [shape: f32[4,128], index: 3, kind: input, shape index: {}]
  %s4 = inlined_call_operand.hbm [shape: f32[4,128], index: 4, kind: input, shape index: {}]
  %s5 = inlined_call_operand.vmem [shape: bf16[256,128], index: 5, kind: input, shape index: {}]
  %s6 = inlined_call_operand.hbm [shape: f32[1,128], index: 6, kind: input, shape index: {}]
  %s7 = inlined_call_operand.vmem [shape: bf16[128,64], index: 7, kind: input, shape index: {}]
  %s8 = inlined_call_operand.hbm [shape: f32[1,64], index: 8, kind: input, shape index: {}]
  %s9 = inlined_call_operand.hbm [shape: bf16[32,128], index: 9, kind: input, shape index: {}]
  %s10 = inlined_call_operand.hbm [shape: bf16[128,256], index: 10, kind: input, shape index: {}]
  %s11 = inlined_call_operand.vmem [shape: f32[1,256], index: 11, kind: input, shape index: {}]
  %s12 = inlined_call_operand.vmem [shape: f32[256,32], index: 12, kind: output, shape index: {0}]
  %s13 = inlined_call_operand.vmem [shape: f32[32,2], index: 13, kind: output, shape index: {1}]
  %14 = xla_tuple %s12, %s13
  %s15 = sld [smem:[#allocation0]]
  $region113: #{embed_cvae_forward.1} parent=0
    _
  %s17 = ssub.s32 1, %s15
  %s18 = scalar_select 0, %s17, %s15
  $region1: #{embed_cvae_forward.1} parent=0
    #allocation2 [shape = 'u8[2048]{0}', space=vmem, size = 0x800, scoped, tag = 'input window, operand 3, single buffered']
    #allocation3 [shape = 's32[2]{0}', space=sflag, size = 0x8, scoped, tag = 'scoped memory for embed_cvae_forward.1']
    #allocation4 [shape = 'u8[2048]{0}', space=vmem, size = 0x800, scoped, tag = 'input window, operand 4, single buffered']
    #allocation5 [shape = 's32[1]{0}', space=sflag, size = 0x4, scoped, tag = 'scoped memory for embed_cvae_forward.1']
    #allocation6 [shape = 'u8[512]{0}', space=vmem, size = 0x400, scoped, tag = 'input window, operand 6, single buffered']
    #allocation7 [shape = 'u8[512]{0}', space=vmem, size = 0x400, scoped, tag = 'input window, operand 8, single buffered']
    #allocation8 [shape = 's32[1]{0}', space=sflag, size = 0x4, scoped, tag = 'scoped memory for embed_cvae_forward.1']
    #allocation9 [shape = 'u8[8192]{0}', space=vmem, size = 0x2000, scoped, tag = 'input window, operand 9, single buffered']
    #allocation10 [shape = 'u8[65536]{0}', space=vmem, size = 0x10000, scoped, tag = 'input window, operand 10, single buffered']
    #allocation11 [shape = 's32[1]{0}', space=sflag, size = 0x4, scoped, tag = 'scoped memory for embed_cvae_forward.1']
    %19 = vsyncpa [#allocation3], 0
    %20 = vsyncpa [#allocation5], 0
    %21 = vsyncpa [#allocation8], 0
    %22 = vsyncpa [#allocation11], 0
    loop: start=0, step=1, limit=6
    $region2: #{embed_cvae_forward.1} parent=1 // loop_pre_header
      _
    $region3: #{embed_cvae_forward.1} parent=1 // loop_header
      %s24 = sphi 0, %s28
      %p25 = scmp.ge.s32.totalorder %s24, 6
      %s34 = sphi 0, %s36
      %s37 = sphi 0, %s34
      %s38 = sphi 0, %s37
      %s54 = sphi 0, %s38
      %s60 = sphi 0, %s62
      %s63 = sphi 0, %s60
      %s64 = sphi 0, %s63
      %s80 = sphi 0, %s64
      %s86 = sphi 0, %s88
      %s89 = sphi 0, %s86
      %s90 = sphi 0, %s89
      %s106 = sphi 0, %s90
      %s110 = sphi 0, %s110
      %s112 = sphi 0, %s110
      %s113 = sphi 0, %s112
      %s127 = sphi 0, %s113
      %s131 = sphi 0, %s131
      %s133 = sphi 0, %s131
      %s134 = sphi 0, %s133
      %s148 = sphi 0, %s134
      %s152 = sphi 0, %s152
      %s154 = sphi 0, %s152
      %s155 = sphi 0, %s154
      %s169 = sphi 0, %s155
      %s173 = sphi 0, %s173
      %s175 = sphi 0, %s173
      %s176 = sphi 0, %s175
      %s190 = sphi 0, %s176
      %s194 = sphi 0, %s194
      %s196 = sphi 0, %s194
      %s197 = sphi 0, %s196
      %s211 = sphi 0, %s197
      %s215 = sphi 0, %s215
      %s217 = sphi 0, %s215
      %s218 = sphi 0, %s217
      %s232 = sphi 0, %s218
      %s236 = sphi 0, %s236
      %s238 = sphi 0, %s236
      %s239 = sphi 0, %s238
      %s253 = sphi 0, %s239
      %s257 = sphi 0, %s257
      %s259 = sphi 0, %s257
      %s260 = sphi 0, %s259
      %s274 = sphi 0, %s260
      %s278 = sphi 0, %s278
      %s280 = sphi 0, %s278
      %s281 = sphi 0, %s280
      %s295 = sphi 0, %s281
      %s301 = sphi 0, %s303
      %s304 = sphi 0, %s301
      %s305 = sphi 0, %s304
      %s321 = sphi 0, %s305
      %s327 = sphi 0, %s329
      %s330 = sphi 0, %s327
      %s331 = sphi 0, %s330
      %s347 = sphi 0, %s331
    $region4: #{embed_cvae_forward.1} parent=1 // loop_header_branch
      %27 = sbr.rel (%p25) target = $region8
    $region5: #{embed_cvae_forward.1} parent=1 // loop_body
      %s29 = ssub.s32 %s24, 1
      %s30 = ssub.s32 %s24, 2
      %s31 = sadd.s32 %s24, 1
      %s32 = ssub.s32 %s24, %s31
      %p33 = scmp.eq.s32.totalorder %s32, 0
      %s35 = sadd.s32 %s34, 1
      %s36 = scalar_select %p33, %s34, %s35
      %p39 = pneg %p33
      %p40 = scmp.eq.s32.totalorder %s24, 3
      %p41 = por %p39, %p40
      %p42 = scmp.ne.s32.totalorder %s34, %s37
      %p43 = scmp.eq.s32.totalorder %s24, 0
      %p44 = por %p42, %p43
      %p45 = scmp.ne.s32.totalorder %s34, %s37
      %p46 = scmp.eq.s32.totalorder %s29, 3
      %p47 = por %p45, %p46
      %p48 = scmp.ne.s32.totalorder %s37, %s38
      %p49 = scmp.eq.s32.totalorder %s29, 0
      %p50 = por %p48, %p49
      %p51 = scmp.ne.s32.totalorder %s37, %s38
      %p52 = scmp.eq.s32.totalorder %s30, 3
      %p53 = por %p51, %p52
      %p55 = scmp.ne.s32.totalorder %s38, %s54
      %p56 = scmp.eq.s32.totalorder %s30, 0
      %p57 = por %p55, %p56
      %s58 = ssub.s32 %s24, %s31
      %p59 = scmp.eq.s32.totalorder %s58, 0
      %s61 = sadd.s32 %s60, 1
      %s62 = scalar_select %p59, %s60, %s61
      %p65 = pneg %p59
      %p66 = scmp.eq.s32.totalorder %s24, 3
      %p67 = por %p65, %p66
      %p68 = scmp.ne.s32.totalorder %s60, %s63
      %p69 = scmp.eq.s32.totalorder %s24, 0
      %p70 = por %p68, %p69
      %p71 = scmp.ne.s32.totalorder %s60, %s63
      %p72 = scmp.eq.s32.totalorder %s29, 3
      %p73 = por %p71, %p72
      %p74 = scmp.ne.s32.totalorder %s63, %s64
      %p75 = scmp.eq.s32.totalorder %s29, 0
      %p76 = por %p74, %p75
      %p77 = scmp.ne.s32.totalorder %s63, %s64
      %p78 = scmp.eq.s32.totalorder %s30, 3
      %p79 = por %p77, %p78
      %p81 = scmp.ne.s32.totalorder %s64, %s80
      %p82 = scmp.eq.s32.totalorder %s30, 0
      %p83 = por %p81, %p82
      %s84 = ssub.s32 %s24, %s31
      %p85 = scmp.eq.s32.totalorder %s84, 0
      %s87 = sadd.s32 %s86, 1
      %s88 = scalar_select %p85, %s86, %s87
      %p91 = pneg %p85
      %p92 = scmp.eq.s32.totalorder %s24, 3
      %p93 = por %p91, %p92
      %p94 = scmp.ne.s32.totalorder %s86, %s89
      %p95 = scmp.eq.s32.totalorder %s24, 0
      %p96 = por %p94, %p95
      %p97 = scmp.ne.s32.totalorder %s86, %s89
      %p98 = scmp.eq.s32.totalorder %s29, 3
      %p99 = por %p97, %p98
      %p100 = scmp.ne.s32.totalorder %s89, %s90
      %p101 = scmp.eq.s32.totalorder %s29, 0
      %p102 = por %p100, %p101
      %p103 = scmp.ne.s32.totalorder %s89, %s90
      %p104 = scmp.eq.s32.totalorder %s30, 3
      %p105 = por %p103, %p104
      %p107 = scmp.ne.s32.totalorder %s90, %s106
      %p108 = scmp.eq.s32.totalorder %s30, 0
      %p109 = por %p107, %p108
      %s111 = sadd.s32 %s110, 1
      %p114 = scmp.eq.s32.totalorder %s24, 3
      %p115 = scmp.ne.s32.totalorder %s110, %s112
      %p116 = scmp.eq.s32.totalorder %s24, 0
      %p117 = por %p115, %p116
      %p118 = scmp.ne.s32.totalorder %s110, %s112
      %p119 = scmp.eq.s32.totalorder %s29, 3
      %p120 = por %p118, %p119
      %p121 = scmp.ne.s32.totalorder %s112, %s113
      %p122 = scmp.eq.s32.totalorder %s29, 0
      %p123 = por %p121, %p122
      %p124 = scmp.ne.s32.totalorder %s112, %s113
      %p125 = scmp.eq.s32.totalorder %s30, 3
      %p126 = por %p124, %p125
      %p128 = scmp.ne.s32.totalorder %s113, %s127
      %p129 = scmp.eq.s32.totalorder %s30, 0
      %p130 = por %p128, %p129
      %s132 = sadd.s32 %s131, 1
      %p135 = scmp.eq.s32.totalorder %s24, 3
      %p136 = scmp.ne.s32.totalorder %s131, %s133
      %p137 = scmp.eq.s32.totalorder %s24, 0
      %p138 = por %p136, %p137
      %p139 = scmp.ne.s32.totalorder %s131, %s133
      %p140 = scmp.eq.s32.totalorder %s29, 3
      %p141 = por %p139, %p140
      %p142 = scmp.ne.s32.totalorder %s133, %s134
      %p143 = scmp.eq.s32.totalorder %s29, 0
      %p144 = por %p142, %p143
      %p145 = scmp.ne.s32.totalorder %s133, %s134
      %p146 = scmp.eq.s32.totalorder %s30, 3
      %p147 = por %p145, %p146
      %p149 = scmp.ne.s32.totalorder %s134, %s148
      %p150 = scmp.eq.s32.totalorder %s30, 0
      %p151 = por %p149, %p150
      %s153 = sadd.s32 %s152, 1
      %p156 = scmp.eq.s32.totalorder %s24, 3
      %p157 = scmp.ne.s32.totalorder %s152, %s154
      %p158 = scmp.eq.s32.totalorder %s24, 0
      %p159 = por %p157, %p158
      %p160 = scmp.ne.s32.totalorder %s152, %s154
      %p161 = scmp.eq.s32.totalorder %s29, 3
      %p162 = por %p160, %p161
      %p163 = scmp.ne.s32.totalorder %s154, %s155
      %p164 = scmp.eq.s32.totalorder %s29, 0
      %p165 = por %p163, %p164
      %p166 = scmp.ne.s32.totalorder %s154, %s155
      %p167 = scmp.eq.s32.totalorder %s30, 3
      %p168 = por %p166, %p167
      %p170 = scmp.ne.s32.totalorder %s155, %s169
      %p171 = scmp.eq.s32.totalorder %s30, 0
      %p172 = por %p170, %p171
      %s174 = sadd.s32 %s173, 1
      %p177 = scmp.eq.s32.totalorder %s24, 3
      %p178 = scmp.ne.s32.totalorder %s173, %s175
      %p179 = scmp.eq.s32.totalorder %s24, 0
      %p180 = por %p178, %p179
      %p181 = scmp.ne.s32.totalorder %s173, %s175
      %p182 = scmp.eq.s32.totalorder %s29, 3
      %p183 = por %p181, %p182
      %p184 = scmp.ne.s32.totalorder %s175, %s176
      %p185 = scmp.eq.s32.totalorder %s29, 0
      %p186 = por %p184, %p185
      %p187 = scmp.ne.s32.totalorder %s175, %s176
      %p188 = scmp.eq.s32.totalorder %s30, 3
      %p189 = por %p187, %p188
      %p191 = scmp.ne.s32.totalorder %s176, %s190
      %p192 = scmp.eq.s32.totalorder %s30, 0
      %p193 = por %p191, %p192
      %s195 = sadd.s32 %s194, 1
      %p198 = scmp.eq.s32.totalorder %s24, 3
      %p199 = scmp.ne.s32.totalorder %s194, %s196
      %p200 = scmp.eq.s32.totalorder %s24, 0
      %p201 = por %p199, %p200
      %p202 = scmp.ne.s32.totalorder %s194, %s196
      %p203 = scmp.eq.s32.totalorder %s29, 3
      %p204 = por %p202, %p203
      %p205 = scmp.ne.s32.totalorder %s196, %s197
      %p206 = scmp.eq.s32.totalorder %s29, 0
      %p207 = por %p205, %p206
      %p208 = scmp.ne.s32.totalorder %s196, %s197
      %p209 = scmp.eq.s32.totalorder %s30, 3
      %p210 = por %p208, %p209
      %p212 = scmp.ne.s32.totalorder %s197, %s211
      %p213 = scmp.eq.s32.totalorder %s30, 0
      %p214 = por %p212, %p213
      %s216 = sadd.s32 %s215, 1
      %p219 = scmp.eq.s32.totalorder %s24, 3
      %p220 = scmp.ne.s32.totalorder %s215, %s217
      %p221 = scmp.eq.s32.totalorder %s24, 0
      %p222 = por %p220, %p221
      %p223 = scmp.ne.s32.totalorder %s215, %s217
      %p224 = scmp.eq.s32.totalorder %s29, 3
      %p225 = por %p223, %p224
      %p226 = scmp.ne.s32.totalorder %s217, %s218
      %p227 = scmp.eq.s32.totalorder %s29, 0
      %p228 = por %p226, %p227
      %p229 = scmp.ne.s32.totalorder %s217, %s218
      %p230 = scmp.eq.s32.totalorder %s30, 3
      %p231 = por %p229, %p230
      %p233 = scmp.ne.s32.totalorder %s218, %s232
      %p234 = scmp.eq.s32.totalorder %s30, 0
      %p235 = por %p233, %p234
      %s237 = sadd.s32 %s236, 1
      %p240 = scmp.eq.s32.totalorder %s24, 3
      %p241 = scmp.ne.s32.totalorder %s236, %s238
      %p242 = scmp.eq.s32.totalorder %s24, 0
      %p243 = por %p241, %p242
      %p244 = scmp.ne.s32.totalorder %s236, %s238
      %p245 = scmp.eq.s32.totalorder %s29, 3
      %p246 = por %p244, %p245
      %p247 = scmp.ne.s32.totalorder %s238, %s239
      %p248 = scmp.eq.s32.totalorder %s29, 0
      %p249 = por %p247, %p248
      %p250 = scmp.ne.s32.totalorder %s238, %s239
      %p251 = scmp.eq.s32.totalorder %s30, 3
      %p252 = por %p250, %p251
      %p254 = scmp.ne.s32.totalorder %s239, %s253
      %p255 = scmp.eq.s32.totalorder %s30, 0
      %p256 = por %p254, %p255
      %s258 = sadd.s32 %s257, 1
      %p261 = scmp.eq.s32.totalorder %s24, 3
      %p262 = scmp.ne.s32.totalorder %s257, %s259
      %p263 = scmp.eq.s32.totalorder %s24, 0
      %p264 = por %p262, %p263
      %p265 = scmp.ne.s32.totalorder %s257, %s259
      %p266 = scmp.eq.s32.totalorder %s29, 3
      %p267 = por %p265, %p266
      %p268 = scmp.ne.s32.totalorder %s259, %s260
      %p269 = scmp.eq.s32.totalorder %s29, 0
      %p270 = por %p268, %p269
      %p271 = scmp.ne.s32.totalorder %s259, %s260
      %p272 = scmp.eq.s32.totalorder %s30, 3
      %p273 = por %p271, %p272
      %p275 = scmp.ne.s32.totalorder %s260, %s274
      %p276 = scmp.eq.s32.totalorder %s30, 0
      %p277 = por %p275, %p276
      %s279 = sadd.s32 %s278, 1
      %p282 = scmp.eq.s32.totalorder %s24, 3
      %p283 = scmp.ne.s32.totalorder %s278, %s280
      %p284 = scmp.eq.s32.totalorder %s24, 0
      %p285 = por %p283, %p284
      %p286 = scmp.ne.s32.totalorder %s278, %s280
      %p287 = scmp.eq.s32.totalorder %s29, 3
      %p288 = por %p286, %p287
      %p289 = scmp.ne.s32.totalorder %s280, %s281
      %p290 = scmp.eq.s32.totalorder %s29, 0
      %p291 = por %p289, %p290
      %p292 = scmp.ne.s32.totalorder %s280, %s281
      %p293 = scmp.eq.s32.totalorder %s30, 3
      %p294 = por %p292, %p293
      %p296 = scmp.ne.s32.totalorder %s281, %s295
      %p297 = scmp.eq.s32.totalorder %s30, 0
      %p298 = por %p296, %p297
      %s299 = ssub.s32 %s24, %s31
      %p300 = scmp.eq.s32.totalorder %s299, 0
      %s302 = sadd.s32 %s301, 1
      %s303 = scalar_select %p300, %s301, %s302
      %p306 = pneg %p300
      %p307 = scmp.eq.s32.totalorder %s24, 3
      %p308 = por %p306, %p307
      %p309 = scmp.ne.s32.totalorder %s301, %s304
      %p310 = scmp.eq.s32.totalorder %s24, 0
      %p311 = por %p309, %p310
      %p312 = scmp.ne.s32.totalorder %s301, %s304
      %p313 = scmp.eq.s32.totalorder %s29, 3
      %p314 = por %p312, %p313
      %p315 = scmp.ne.s32.totalorder %s304, %s305
      %p316 = scmp.eq.s32.totalorder %s29, 0
      %p317 = por %p315, %p316
      %p318 = scmp.ne.s32.totalorder %s304, %s305
      %p319 = scmp.eq.s32.totalorder %s30, 3
      %p320 = por %p318, %p319
      %p322 = scmp.ne.s32.totalorder %s305, %s321
      %p323 = scmp.eq.s32.totalorder %s30, 0
      %p324 = por %p322, %p323
      %s325 = ssub.s32 %s24, %s31
      %p326 = scmp.eq.s32.totalorder %s325, 0
      %s328 = sadd.s32 %s327, 1
      %s329 = scalar_select %p326, %s327, %s328
      %p332 = pneg %p326
      %p333 = scmp.eq.s32.totalorder %s24, 3
      %p334 = por %p332, %p333
      %p335 = scmp.ne.s32.totalorder %s327, %s330
      %p336 = scmp.eq.s32.totalorder %s24, 0
      %p337 = por %p335, %p336
      %p338 = scmp.ne.s32.totalorder %s327, %s330
      %p339 = scmp.eq.s32.totalorder %s29, 3
      %p340 = por %p338, %p339
      %p341 = scmp.ne.s32.totalorder %s330, %s331
      %p342 = scmp.eq.s32.totalorder %s29, 0
      %p343 = por %p341, %p342
      %p344 = scmp.ne.s32.totalorder %s330, %s331
      %p345 = scmp.eq.s32.totalorder %s30, 3
      %p346 = por %p344, %p345
      %p348 = scmp.ne.s32.totalorder %s331, %s347
      %p349 = scmp.eq.s32.totalorder %s30, 0
      %p350 = por %p348, %p349
      %p351 = scmp.le.s32.totalorder 1, %s24
      %p352 = scmp.lt.s32.totalorder %s24, 5
      %p353 = pnand %p351, %p352
      %p354 = pneg %p353
      // Predicated region
      $region9: #{embed_cvae_forward.1} parent=5 // pred_check
        _
      $region10: #{embed_cvae_forward.1} parent=5 // pred_check_branch
        %356 = sbr.rel (%p353) target = $region12
      $region11: #{embed_cvae_forward.1} parent=5 // pred_region
        %s357 = ssub.s32 %s24, 1
        // Predicated region
        $region13: #{embed_cvae_forward.1} parent=11 // pred_check
          %p358 = pneg %p123
        $region14: #{embed_cvae_forward.1} parent=11 // pred_check_branch
          %360 = sbr.rel (%p358) target = $region16
        $region15: #{embed_cvae_forward.1} parent=11 // pred_region
          %362 = vsyncadd [#allocation3], 0
          %s364 = sshll.u32 %s3, 4
          %s365 = int_to_ptr.hbm [resolvable:$true] %s364
          %s366 = sshll.u32 [#allocation2], 4
          %s367 = int_to_ptr.vmem [resolvable:$true] %s366
          %369 = dma.hbm_to_vmem [thread:$0]  %s365, 64, %s367, [#allocation3]
        $region16: #{embed_cvae_forward.1} parent=11 // pred_fallthru
          _
        // Predicated region
        $region17: #{embed_cvae_forward.1} parent=11 // pred_check
          %p370 = pneg %p144
        $region18: #{embed_cvae_forward.1} parent=11 // pred_check_branch
          %372 = sbr.rel (%p370) target = $region20
        $region19: #{embed_cvae_forward.1} parent=11 // pred_region
          %374 = vsyncadd [#allocation5], 0
          %s376 = sshll.u32 %s4, 4
          %s377 = int_to_ptr.hbm [resolvable:$true] %s376
          %s378 = sshll.u32 [#allocation4], 4
          %s379 = int_to_ptr.vmem [resolvable:$true] %s378
          %381 = dma.hbm_to_vmem [thread:$0]  %s377, 64, %s379, [#allocation5]
        $region20: #{embed_cvae_forward.1} parent=11 // pred_fallthru
          _
        // Predicated region
        $region21: #{embed_cvae_forward.1} parent=11 // pred_check
          %p382 = pneg %p165
        $region22: #{embed_cvae_forward.1} parent=11 // pred_check_branch
          %384 = sbr.rel (%p382) target = $region24
        $region23: #{embed_cvae_forward.1} parent=11 // pred_region
          _
        $region24: #{embed_cvae_forward.1} parent=11 // pred_fallthru
          _
        // Predicated region
        $region25: #{embed_cvae_forward.1} parent=11 // pred_check
          %p385 = pneg %p186
        $region26: #{embed_cvae_forward.1} parent=11 // pred_check_branch
          %387 = sbr.rel (%p385) target = $region28
        $region27: #{embed_cvae_forward.1} parent=11 // pred_region
          %389 = vsyncadd [#allocation5], 0
          %s391 = sshll.u32 %s6, 4
          %s392 = int_to_ptr.hbm [resolvable:$true] %s391
          %s393 = sshll.u32 [#allocation6], 4
          %s394 = int_to_ptr.vmem [resolvable:$true] %s393
          %396 = dma.hbm_to_vmem [thread:$0]  %s392, 16, %s394, [#allocation5]
        $region28: #{embed_cvae_forward.1} parent=11 // pred_fallthru
          _
        // Predicated region
        $region29: #{embed_cvae_forward.1} parent=11 // pred_check
          %p397 = pneg %p207
        $region30: #{embed_cvae_forward.1} parent=11 // pred_check_branch
          %399 = sbr.rel (%p397) target = $region32
        $region31: #{embed_cvae_forward.1} parent=11 // pred_region
          _
        $region32: #{embed_cvae_forward.1} parent=11 // pred_fallthru
          _
        // Predicated region
        $region33: #{embed_cvae_forward.1} parent=11 // pred_check
          %p400 = pneg %p228
        $region34: #{embed_cvae_forward.1} parent=11 // pred_check_branch
          %402 = sbr.rel (%p400) target = $region36
        $region35: #{embed_cvae_forward.1} parent=11 // pred_region
          %404 = vsyncadd [#allocation8], 0
          %s406 = sshll.u32 %s8, 4
          %s407 = int_to_ptr.hbm [resolvable:$true] %s406
          %s408 = sshll.u32 [#allocation7], 4
          %s409 = int_to_ptr.vmem [resolvable:$true] %s408
          %411 = dma.hbm_to_vmem [thread:$0]  %s407, 16, %s409, [#allocation8]
        $region36: #{embed_cvae_forward.1} parent=11 // pred_fallthru
          _
        // Predicated region
        $region37: #{embed_cvae_forward.1} parent=11 // pred_check
          %p412 = pneg %p249
        $region38: #{embed_cvae_forward.1} parent=11 // pred_check_branch
          %414 = sbr.rel (%p412) target = $region40
        $region39: #{embed_cvae_forward.1} parent=11 // pred_region
          %416 = vsyncadd [#allocation8], 0
          %s417 = sshll.u32 %s9, 4
          %s418 = int_to_ptr.hbm [resolvable:$true] %s417
          %s419 = sshll.u32 [#allocation9], 4
          %s420 = int_to_ptr.vmem [resolvable:$true] %s419
          %425 = dma.hbm_to_vmem [thread:$0]  %s418, 256, %s420, [#allocation8], 64, 64, 4
        $region40: #{embed_cvae_forward.1} parent=11 // pred_fallthru
          _
        // Predicated region
        $region41: #{embed_cvae_forward.1} parent=11 // pred_check
          %p426 = pneg %p270
        $region42: #{embed_cvae_forward.1} parent=11 // pred_check_branch
          %428 = sbr.rel (%p426) target = $region44
        $region43: #{embed_cvae_forward.1} parent=11 // pred_region
          %430 = vsyncadd [#allocation11], 0
          %s431 = sshll.u32 %s10, 4
          %s432 = int_to_ptr.hbm [resolvable:$true] %s431
          %s433 = sshll.u32 [#allocation10], 4
          %s434 = int_to_ptr.vmem [resolvable:$true] %s433
          %439 = dma.hbm_to_vmem [thread:$0]  %s432, 2048, %s434, [#allocation11], 128, 128, 8
        $region44: #{embed_cvae_forward.1} parent=11 // pred_fallthru
          _
        // Predicated region
        $region45: #{embed_cvae_forward.1} parent=11 // pred_check
          %p440 = pneg %p291
        $region46: #{embed_cvae_forward.1} parent=11 // pred_check_branch
          %442 = sbr.rel (%p440) target = $region48
        $region47: #{embed_cvae_forward.1} parent=11 // pred_region
          _
        $region48: #{embed_cvae_forward.1} parent=11 // pred_fallthru
          _
      $region12: #{embed_cvae_forward.1} parent=5 // pred_fallthru
        _
      %p443 = scmp.lt.s32.totalorder %s24, 4
      // Predicated region
      $region49: #{embed_cvae_forward.1} parent=5 // pred_check
        %p444 = pneg %p443
      $region50: #{embed_cvae_forward.1} parent=5 // pred_check_branch
        %446 = sbr.rel (%p444) target = $region52
      $region51: #{embed_cvae_forward.1} parent=5 // pred_region
        // Predicated region
        $region53: #{embed_cvae_forward.1} parent=51 // pred_check
          %p447 = pneg %p44
        $region54: #{embed_cvae_forward.1} parent=51 // pred_check_branch
          %449 = sbr.rel (%p447) target = $region56
        $region55: #{embed_cvae_forward.1} parent=51 // pred_region
          %s450 = smul.u32 8, %s24
          %p451 = scmp.lt.s32.totalorder %s450, 31
          %s452 = scalar_select %p451, %s450, 31
          %s453 = smul.addr %s452, 2
          %s454 = smul.addr %s453, 8
          %s455 = scalar_lea.vmem %s0, %s454
          %s456 = smul.u32 8, %s24
        $region56: #{embed_cvae_forward.1} parent=51 // pred_fallthru
          _
        // Predicated region
        $region57: #{embed_cvae_forward.1} parent=51 // pred_check
          %p457 = pneg %p70
        $region58: #{embed_cvae_forward.1} parent=51 // pred_check_branch
          %459 = sbr.rel (%p457) target = $region60
        $region59: #{embed_cvae_forward.1} parent=51 // pred_region
          %s460 = smul.u32 8, %s24
          %p461 = scmp.lt.s32.totalorder %s460, 31
          %s462 = scalar_select %p461, %s460, 31
          %s463 = smul.addr %s462, 8
          %s464 = scalar_lea.vmem %s1, %s463
          %s465 = smul.u32 8, %s24
        $region60: #{embed_cvae_forward.1} parent=51 // pred_fallthru
          _
        // Predicated region
        $region61: #{embed_cvae_forward.1} parent=51 // pred_check
          %p466 = pneg %p96
        $region62: #{embed_cvae_forward.1} parent=51 // pred_check_branch
          %468 = sbr.rel (%p466) target = $region64
        $region63: #{embed_cvae_forward.1} parent=51 // pred_region
          %s469 = smul.u32 8, %s24
          %p470 = scmp.lt.s32.totalorder %s469, 31
          %s471 = scalar_select %p470, %s469, 31
          %s472 = smul.addr %s471, 8
          %s473 = scalar_lea.vmem %s2, %s472
          %s474 = smul.u32 8, %s24
        $region64: #{embed_cvae_forward.1} parent=51 // pred_fallthru
          _
      $region52: #{embed_cvae_forward.1} parent=5 // pred_fallthru
        _
      %p475 = scmp.le.s32.totalorder 1, %s24
      %p476 = scmp.lt.s32.totalorder %s24, 5
      %p477 = pnand %p475, %p476
      %p478 = pneg %p477
      // Predicated region
      $region65: #{embed_cvae_forward.1} parent=5 // pred_check
        _
      $region66: #{embed_cvae_forward.1} parent=5 // pred_check_branch
        %480 = sbr.rel (%p477) target = $region68
      $region67: #{embed_cvae_forward.1} parent=5 // pred_region
        %s481 = ssub.s32 %s24, 1
        // Predicated region
        $region69: #{embed_cvae_forward.1} parent=67 // pred_check
          %p482 = pneg %p123
        $region70: #{embed_cvae_forward.1} parent=67 // pred_check_branch
          %484 = sbr.rel (%p482) target = $region72
        $region71: #{embed_cvae_forward.1} parent=67 // pred_region
          %486 = dma.done [#allocation3], 64
        $region72: #{embed_cvae_forward.1} parent=67 // pred_fallthru
          _
        // Predicated region
        $region73: #{embed_cvae_forward.1} parent=67 // pred_check
          %p487 = pneg %p144
        $region74: #{embed_cvae_forward.1} parent=67 // pred_check_branch
          %489 = sbr.rel (%p487) target = $region76
        $region75: #{embed_cvae_forward.1} parent=67 // pred_region
          %491 = dma.done [#allocation5], 64
        $region76: #{embed_cvae_forward.1} parent=67 // pred_fallthru
          _
        // Predicated region
        $region77: #{embed_cvae_forward.1} parent=67 // pred_check
          %p492 = pneg %p186
        $region78: #{embed_cvae_forward.1} parent=67 // pred_check_branch
          %494 = sbr.rel (%p492) target = $region80
        $region79: #{embed_cvae_forward.1} parent=67 // pred_region
          %496 = dma.done [#allocation5], 16
        $region80: #{embed_cvae_forward.1} parent=67 // pred_fallthru
          _
        // Predicated region
        $region81: #{embed_cvae_forward.1} parent=67 // pred_check
          %p497 = pneg %p228
        $region82: #{embed_cvae_forward.1} parent=67 // pred_check_branch
          %499 = sbr.rel (%p497) target = $region84
        $region83: #{embed_cvae_forward.1} parent=67 // pred_region
          %501 = dma.done [#allocation8], 16
        $region84: #{embed_cvae_forward.1} parent=67 // pred_fallthru
          _
        // Predicated region
        $region85: #{embed_cvae_forward.1} parent=67 // pred_check
          %p502 = pneg %p249
        $region86: #{embed_cvae_forward.1} parent=67 // pred_check_branch
          %504 = sbr.rel (%p502) target = $region88
        $region87: #{embed_cvae_forward.1} parent=67 // pred_region
          %506 = dma.done [#allocation8], 256
        $region88: #{embed_cvae_forward.1} parent=67 // pred_fallthru
          _
        // Predicated region
        $region89: #{embed_cvae_forward.1} parent=67 // pred_check
          %p507 = pneg %p270
        $region90: #{embed_cvae_forward.1} parent=67 // pred_check_branch
          %509 = sbr.rel (%p507) target = $region92
        $region91: #{embed_cvae_forward.1} parent=67 // pred_region
          %511 = dma.done [#allocation11], 2048
        $region92: #{embed_cvae_forward.1} parent=67 // pred_fallthru
          _
        %s512 = smul.u32 8, %s29
        %p513 = scmp.lt.s32.totalorder %s512, 31
        %s514 = scalar_select %p513, %s512, 31
        %s515 = smul.addr %s514, 2
        %s516 = smul.addr %s515, 8
        %s517 = scalar_lea.vmem %s0, %s516
        %p518 = pneg %p50
        %p519 = pneg %p47
        %s520 = smul.u32 8, %s29
        %p521 = scmp.lt.s32.totalorder %s520, 31
        %s522 = scalar_select %p521, %s520, 31
        %s523 = smul.addr %s522, 8
        %s524 = scalar_lea.vmem %s1, %s523
        %p525 = pneg %p76
        %p526 = pneg %p73
        %s527 = smul.u32 8, %s29
        %p528 = scmp.lt.s32.totalorder %s527, 31
        %s529 = scalar_select %p528, %s527, 31
        %s530 = smul.addr %s529, 8
        %s531 = scalar_lea.vmem %s2, %s530
        %p532 = pneg %p102
        %p533 = pneg %p99
        %p534 = pneg %p123
        %p535 = pneg %p120
        %p536 = pneg %p144
        %p537 = pneg %p141
        %p538 = pneg %p165
        %p539 = pneg %p162
        %p540 = pneg %p186
        %p541 = pneg %p183
        %p542 = pneg %p207
        %p543 = pneg %p204
        %p544 = pneg %p228
        %p545 = pneg %p225
        %p546 = pneg %p249
        %p547 = pneg %p246
        %p548 = pneg %p270
        %p549 = pneg %p267
        %p550 = pneg %p291
        %p551 = pneg %p288
        %p552 = pneg %p317
        %p553 = pneg %p314
        %s554 = smul.u32 8, %s29
        %p555 = scmp.lt.s32.totalorder %s554, 31
        %s556 = scalar_select %p555, %s554, 31
        %s557 = smul.addr %s556, 8
        %s558 = scalar_lea.vmem %s12, %s557
        %p559 = pneg %p343
        %p560 = pneg %p340
        %p561 = scmp.lt.s32.totalorder %s29, 3
        %s562 = scalar_select %p561, %s29, 3
        %s563 = smul.addr %s562, 8
        %s564 = scalar_lea.vmem %s13, %s563
        %s565 = smul.u32 8, %s29
        %p566 = scmp.lt.s32.totalorder %s565, 31
        %s567 = scalar_select %p566, %s565, 31
        %s568 = smul.addr %s567, 2
        %s569 = smul.addr %s568, 8
        %s570 = scalar_lea.vmem %s0, %s569
        %s571 = smul.u32 8, %s29
        %s572 = smul.u32 8, %s29
        %p573 = scmp.lt.s32.totalorder %s572, 31
        %s574 = scalar_select %p573, %s572, 31
        %s575 = smul.addr %s574, 8
        %s576 = scalar_lea.vmem %s1, %s575
        %s577 = smul.u32 8, %s29
        %s578 = smul.u32 8, %s29
        %p579 = scmp.lt.s32.totalorder %s578, 31
        %s580 = scalar_select %p579, %s578, 31
        %s581 = smul.addr %s580, 8
        %s582 = scalar_lea.vmem %s2, %s581
        %s583 = smul.u32 8, %s29
        %s584 = smul.u32 8, %s29
        %p585 = scmp.lt.s32.totalorder %s584, 31
        %s586 = scalar_select %p585, %s584, 31
        %s587 = smul.addr %s586, 8
        %s588 = scalar_lea.vmem %s12, %s587
        %s589 = smul.u32 8, %s29
        %p590 = scmp.lt.s32.totalorder %s29, 3
        %s591 = scalar_select %p590, %s29, 3
        %s592 = smul.addr %s591, 8
        %s593 = scalar_lea.vmem %s13, %s592
        %v595 = vld [vmem:[%s570] sm:$0xff]
        %v596 = vld [vmem:[%s570 + $0x8] sm:$0xff]
        %v597 = vld [vmem:[%s570 + $0x10] sm:$0xff]
        %v598 = vld [vmem:[%s570 + $0x18] sm:$0xff]
        %v599 = vld [vmem:[%s570 + $0x20] sm:$0xff]
        %v600 = vld [vmem:[%s570 + $0x28] sm:$0xff]
        %v601 = vld [vmem:[%s570 + $0x30] sm:$0xff]
        %v602 = vld [vmem:[%s570 + $0x38] sm:$0xff]
        %v603 = vld [vmem:[%s570 + $0x40] sm:$0xff]
        %v604 = vld [vmem:[%s570 + $0x48] sm:$0xff]
        %v605 = vld [vmem:[%s570 + $0x50] sm:$0xff]
        %v606 = vld [vmem:[%s570 + $0x58] sm:$0xff]
        %v607 = vld [vmem:[%s570 + $0x60] sm:$0xff]
        %v608 = vld [vmem:[%s570 + $0x68] sm:$0xff]
        %v609 = vld [vmem:[%s570 + $0x70] sm:$0xff]
        %v610 = vld [vmem:[%s570 + $0x78] sm:$0xff]
        %v611 = vld [vmem:[%s576] sm:$0xff]
        %v612 = vld [vmem:[%s576 + $0x8] sm:$0xff]
        %v613 = vld [vmem:[%s576 + $0x10] sm:$0xff]
        %v614 = vld [vmem:[%s576 + $0x18] sm:$0xff]
        %v615 = vld [vmem:[%s576 + $0x20] sm:$0xff]
        %v616 = vld [vmem:[%s576 + $0x28] sm:$0xff]
        %v617 = vld [vmem:[%s576 + $0x30] sm:$0xff]
        %v618 = vld [vmem:[%s576 + $0x38] sm:$0xff]
        %vm619 = vcmp.eq.s32.totalorder %v611, 0
        %vm620 = vcmp.eq.s32.totalorder %v612, 0
        %vm621 = vcmp.eq.s32.totalorder %v613, 0
        %vm622 = vcmp.eq.s32.totalorder %v614, 0
        %vm623 = vcmp.eq.s32.totalorder %v615, 0
        %vm624 = vcmp.eq.s32.totalorder %v616, 0
        %vm625 = vcmp.eq.s32.totalorder %v617, 0
        %vm626 = vcmp.eq.s32.totalorder %v618, 0
        %v627 = vsel %vm619, 1, 0
        %v628 = vsel %vm620, 1, 0
        %v629 = vsel %vm621, 1, 0
        %v630 = vsel %vm622, 1, 0
        %v631 = vsel %vm623, 1, 0
        %v632 = vsel %vm624, 1, 0
        %v633 = vsel %vm625, 1, 0
        %v634 = vsel %vm626, 1, 0
        %v635 = vcvt.s32.f32 %v627
        %v636 = vcvt.s32.f32 %v628
        %v637 = vcvt.s32.f32 %v629
        %v638 = vcvt.s32.f32 %v630
        %v639 = vcvt.s32.f32 %v631
        %v640 = vcvt.s32.f32 %v632
        %v641 = vcvt.s32.f32 %v633
        %v642 = vcvt.s32.f32 %v634
        %v643 = vld [vmem:[#allocation2] sm:$0x1]
        %645 = vset.pattern.permute.xlu0 0
        %646 = vperm.xlu0 %645, %v635
        %v647 = vpop.permute.xlu0 %646
        %650 = vset.pattern.permute.xlu0 0
        %651 = vperm.xlu0 %650, %v636
        %v652 = vpop.permute.xlu0 %651
        %655 = vset.pattern.permute.xlu0 0
        %656 = vperm.xlu0 %655, %v637
        %v657 = vpop.permute.xlu0 %656
        %660 = vset.pattern.permute.xlu0 0
        %661 = vperm.xlu0 %660, %v638
        %v662 = vpop.permute.xlu0 %661
        %665 = vset.pattern.permute.xlu0 0
        %666 = vperm.xlu0 %665, %v639
        %v667 = vpop.permute.xlu0 %666
        %670 = vset.pattern.permute.xlu0 0
        %671 = vperm.xlu0 %670, %v640
        %v672 = vpop.permute.xlu0 %671
        %675 = vset.pattern.permute.xlu0 0
        %676 = vperm.xlu0 %675, %v641
        %v677 = vpop.permute.xlu0 %676
        %680 = vset.pattern.permute.xlu0 0
        %681 = vperm.xlu0 %680, %v642
        %v682 = vpop.permute.xlu0 %681
        %v684 = vperm.slane %v643, 0
        %v685 = vmul.f32 %v647, %v684
        %v686 = vmul.f32 %v652, %v684
        %v687 = vmul.f32 %v657, %v684
        %v688 = vmul.f32 %v662, %v684
        %v689 = vmul.f32 %v667, %v684
        %v690 = vmul.f32 %v672, %v684
        %v691 = vmul.f32 %v677, %v684
        %v692 = vmul.f32 %v682, %v684
        %v693 = vadd.f32 %v685, 0.0
        %v694 = vadd.f32 %v686, 0.0
        %v695 = vadd.f32 %v687, 0.0
        %v696 = vadd.f32 %v688, 0.0
        %v697 = vadd.f32 %v689, 0.0
        %v698 = vadd.f32 %v690, 0.0
        %v699 = vadd.f32 %v691, 0.0
        %v700 = vadd.f32 %v692, 0.0
        %v701 = vld [vmem:[#allocation4] sm:$0x1]
        %v702 = vperm.slane %v701, 0
        %v703 = vmul.f32 %v647, %v702
        %v704 = vmul.f32 %v652, %v702
        %v705 = vmul.f32 %v657, %v702
        %v706 = vmul.f32 %v662, %v702
        %v707 = vmul.f32 %v667, %v702
        %v708 = vmul.f32 %v672, %v702
        %v709 = vmul.f32 %v677, %v702
        %v710 = vmul.f32 %v682, %v702
        %v711 = vadd.f32 %v703, 0.0
        %v712 = vadd.f32 %v704, 0.0
        %v713 = vadd.f32 %v705, 0.0
        %v714 = vadd.f32 %v706, 0.0
        %v715 = vadd.f32 %v707, 0.0
        %v716 = vadd.f32 %v708, 0.0
        %v717 = vadd.f32 %v709, 0.0
        %v718 = vadd.f32 %v710, 0.0
        %vm719 = vcmp.eq.s32.totalorder %v611, 1
        %vm720 = vcmp.eq.s32.totalorder %v612, 1
        %vm721 = vcmp.eq.s32.totalorder %v613, 1
        %vm722 = vcmp.eq.s32.totalorder %v614, 1
        %vm723 = vcmp.eq.s32.totalorder %v615, 1
        %vm724 = vcmp.eq.s32.totalorder %v616, 1
        %vm725 = vcmp.eq.s32.totalorder %v617, 1
        %vm726 = vcmp.eq.s32.totalorder %v618, 1
        %v727 = vsel %vm719, 1, 0
        %v728 = vsel %vm720, 1, 0
        %v729 = vsel %vm721, 1, 0
        %v730 = vsel %vm722, 1, 0
        %v731 = vsel %vm723, 1, 0
        %v732 = vsel %vm724, 1, 0
        %v733 = vsel %vm725, 1, 0
        %v734 = vsel %vm726, 1, 0
        %v735 = vcvt.s32.f32 %v727
        %v736 = vcvt.s32.f32 %v728
        %v737 = vcvt.s32.f32 %v729
        %v738 = vcvt.s32.f32 %v730
        %v739 = vcvt.s32.f32 %v731
        %v740 = vcvt.s32.f32 %v732
        %v741 = vcvt.s32.f32 %v733
        %v742 = vcvt.s32.f32 %v734
        %v743 = vld [vmem:[#allocation2 + $0x1] sm:$0x1]
        %745 = vset.pattern.permute.xlu0 0
        %746 = vperm.xlu0 %745, %v735
        %v747 = vpop.permute.xlu0 %746
        %750 = vset.pattern.permute.xlu0 0
        %751 = vperm.xlu0 %750, %v736
        %v752 = vpop.permute.xlu0 %751
        %755 = vset.pattern.permute.xlu0 0
        %756 = vperm.xlu0 %755, %v737
        %v757 = vpop.permute.xlu0 %756
        %760 = vset.pattern.permute.xlu0 0
        %761 = vperm.xlu0 %760, %v738
        %v762 = vpop.permute.xlu0 %761
        %765 = vset.pattern.permute.xlu0 0
        %766 = vperm.xlu0 %765, %v739
        %v767 = vpop.permute.xlu0 %766
        %770 = vset.pattern.permute.xlu0 0
        %771 = vperm.xlu0 %770, %v740
        %v772 = vpop.permute.xlu0 %771
        %775 = vset.pattern.permute.xlu0 0
        %776 = vperm.xlu0 %775, %v741
        %v777 = vpop.permute.xlu0 %776
        %780 = vset.pattern.permute.xlu0 0
        %781 = vperm.xlu0 %780, %v742
        %v782 = vpop.permute.xlu0 %781
        %v784 = vperm.slane %v743, 0
        %v785 = vmul.f32 %v747, %v784
        %v786 = vmul.f32 %v752, %v784
        %v787 = vmul.f32 %v757, %v784
        %v788 = vmul.f32 %v762, %v784
        %v789 = vmul.f32 %v767, %v784
        %v790 = vmul.f32 %v772, %v784
        %v791 = vmul.f32 %v777, %v784
        %v792 = vmul.f32 %v782, %v784
        %v793 = vadd.f32 %v693, %v785
        %v794 = vadd.f32 %v694, %v786
        %v795 = vadd.f32 %v695, %v787
        %v796 = vadd.f32 %v696, %v788
        %v797 = vadd.f32 %v697, %v789
        %v798 = vadd.f32 %v698, %v790
        %v799 = vadd.f32 %v699, %v791
        %v800 = vadd.f32 %v700, %v792
        %v801 = vld [vmem:[#allocation4 + $0x1] sm:$0x1]
        %v802 = vperm.slane %v801, 0
        %v803 = vmul.f32 %v747, %v802
        %v804 = vmul.f32 %v752, %v802
        %v805 = vmul.f32 %v757, %v802
        %v806 = vmul.f32 %v762, %v802
        %v807 = vmul.f32 %v767, %v802
        %v808 = vmul.f32 %v772, %v802
        %v809 = vmul.f32 %v777, %v802
        %v810 = vmul.f32 %v782, %v802
        %v811 = vadd.f32 %v711, %v803
        %v812 = vadd.f32 %v712, %v804
        %v813 = vadd.f32 %v713, %v805
        %v814 = vadd.f32 %v714, %v806
        %v815 = vadd.f32 %v715, %v807
        %v816 = vadd.f32 %v716, %v808
        %v817 = vadd.f32 %v717, %v809
        %v818 = vadd.f32 %v718, %v810
        %vm819 = vcmp.eq.s32.totalorder %v611, 2
        %vm820 = vcmp.eq.s32.totalorder %v612, 2
        %vm821 = vcmp.eq.s32.totalorder %v613, 2
        %vm822 = vcmp.eq.s32.totalorder %v614, 2
        %vm823 = vcmp.eq.s32.totalorder %v615, 2
        %vm824 = vcmp.eq.s32.totalorder %v616, 2
        %vm825 = vcmp.eq.s32.totalorder %v617, 2
        %vm826 = vcmp.eq.s32.totalorder %v618, 2
        %v827 = vsel %vm819, 1, 0
        %v828 = vsel %vm820, 1, 0
        %v829 = vsel %vm821, 1, 0
        %v830 = vsel %vm822, 1, 0
        %v831 = vsel %vm823, 1, 0
        %v832 = vsel %vm824, 1, 0
        %v833 = vsel %vm825, 1, 0
        %v834 = vsel %vm826, 1, 0
        %v835 = vcvt.s32.f32 %v827
        %v836 = vcvt.s32.f32 %v828
        %v837 = vcvt.s32.f32 %v829
        %v838 = vcvt.s32.f32 %v830
        %v839 = vcvt.s32.f32 %v831
        %v840 = vcvt.s32.f32 %v832
        %v841 = vcvt.s32.f32 %v833
        %v842 = vcvt.s32.f32 %v834
        %v843 = vld [vmem:[#allocation2 + $0x2] sm:$0x1]
        %845 = vset.pattern.permute.xlu0 0
        %846 = vperm.xlu0 %845, %v835
        %v847 = vpop.permute.xlu0 %846
        %850 = vset.pattern.permute.xlu0 0
        %851 = vperm.xlu0 %850, %v836
        %v852 = vpop.permute.xlu0 %851
        %855 = vset.pattern.permute.xlu0 0
        %856 = vperm.xlu0 %855, %v837
        %v857 = vpop.permute.xlu0 %856
        %860 = vset.pattern.permute.xlu0 0
        %861 = vperm.xlu0 %860, %v838
        %v862 = vpop.permute.xlu0 %861
        %865 = vset.pattern.permute.xlu0 0
        %866 = vperm.xlu0 %865, %v839
        %v867 = vpop.permute.xlu0 %866
        %870 = vset.pattern.permute.xlu0 0
        %871 = vperm.xlu0 %870, %v840
        %v872 = vpop.permute.xlu0 %871
        %875 = vset.pattern.permute.xlu0 0
        %876 = vperm.xlu0 %875, %v841
        %v877 = vpop.permute.xlu0 %876
        %880 = vset.pattern.permute.xlu0 0
        %881 = vperm.xlu0 %880, %v842
        %v882 = vpop.permute.xlu0 %881
        %v884 = vperm.slane %v843, 0
        %v885 = vmul.f32 %v847, %v884
        %v886 = vmul.f32 %v852, %v884
        %v887 = vmul.f32 %v857, %v884
        %v888 = vmul.f32 %v862, %v884
        %v889 = vmul.f32 %v867, %v884
        %v890 = vmul.f32 %v872, %v884
        %v891 = vmul.f32 %v877, %v884
        %v892 = vmul.f32 %v882, %v884
        %v893 = vadd.f32 %v793, %v885
        %v894 = vadd.f32 %v794, %v886
        %v895 = vadd.f32 %v795, %v887
        %v896 = vadd.f32 %v796, %v888
        %v897 = vadd.f32 %v797, %v889
        %v898 = vadd.f32 %v798, %v890
        %v899 = vadd.f32 %v799, %v891
        %v900 = vadd.f32 %v800, %v892
        %v901 = vld [vmem:[#allocation4 + $0x2] sm:$0x1]
        %v902 = vperm.slane %v901, 0
        %v903 = vmul.f32 %v847, %v902
        %v904 = vmul.f32 %v852, %v902
        %v905 = vmul.f32 %v857, %v902
        %v906 = vmul.f32 %v862, %v902
        %v907 = vmul.f32 %v867, %v902
        %v908 = vmul.f32 %v872, %v902
        %v909 = vmul.f32 %v877, %v902
        %v910 = vmul.f32 %v882, %v902
        %v911 = vadd.f32 %v811, %v903
        %v912 = vadd.f32 %v812, %v904
        %v913 = vadd.f32 %v813, %v905
        %v914 = vadd.f32 %v814, %v906
        %v915 = vadd.f32 %v815, %v907
        %v916 = vadd.f32 %v816, %v908
        %v917 = vadd.f32 %v817, %v909
        %v918 = vadd.f32 %v818, %v910
        %vm919 = vcmp.eq.s32.totalorder %v611, 3
        %vm920 = vcmp.eq.s32.totalorder %v612, 3
        %vm921 = vcmp.eq.s32.totalorder %v613, 3
        %vm922 = vcmp.eq.s32.totalorder %v614, 3
        %vm923 = vcmp.eq.s32.totalorder %v615, 3
        %vm924 = vcmp.eq.s32.totalorder %v616, 3
        %vm925 = vcmp.eq.s32.totalorder %v617, 3
        %vm926 = vcmp.eq.s32.totalorder %v618, 3
        %v927 = vsel %vm919, 1, 0
        %v928 = vsel %vm920, 1, 0
        %v929 = vsel %vm921, 1, 0
        %v930 = vsel %vm922, 1, 0
        %v931 = vsel %vm923, 1, 0
        %v932 = vsel %vm924, 1, 0
        %v933 = vsel %vm925, 1, 0
        %v934 = vsel %vm926, 1, 0
        %v935 = vcvt.s32.f32 %v927
        %v936 = vcvt.s32.f32 %v928
        %v937 = vcvt.s32.f32 %v929
        %v938 = vcvt.s32.f32 %v930
        %v939 = vcvt.s32.f32 %v931
        %v940 = vcvt.s32.f32 %v932
        %v941 = vcvt.s32.f32 %v933
        %v942 = vcvt.s32.f32 %v934
        %v943 = vld [vmem:[#allocation2 + $0x3] sm:$0x1]
        %945 = vset.pattern.permute.xlu0 0
        %946 = vperm.xlu0 %945, %v935
        %v947 = vpop.permute.xlu0 %946
        %950 = vset.pattern.permute.xlu0 0
        %951 = vperm.xlu0 %950, %v936
        %v952 = vpop.permute.xlu0 %951
        %955 = vset.pattern.permute.xlu0 0
        %956 = vperm.xlu0 %955, %v937
        %v957 = vpop.permute.xlu0 %956
        %960 = vset.pattern.permute.xlu0 0
        %961 = vperm.xlu0 %960, %v938
        %v962 = vpop.permute.xlu0 %961
        %965 = vset.pattern.permute.xlu0 0
        %966 = vperm.xlu0 %965, %v939
        %v967 = vpop.permute.xlu0 %966
        %970 = vset.pattern.permute.xlu0 0
        %971 = vperm.xlu0 %970, %v940
        %v972 = vpop.permute.xlu0 %971
        %975 = vset.pattern.permute.xlu0 0
        %976 = vperm.xlu0 %975, %v941
        %v977 = vpop.permute.xlu0 %976
        %980 = vset.pattern.permute.xlu0 0
        %981 = vperm.xlu0 %980, %v942
        %v982 = vpop.permute.xlu0 %981
        %v984 = vperm.slane %v943, 0
        %v985 = vmul.f32 %v947, %v984
        %v986 = vmul.f32 %v952, %v984
        %v987 = vmul.f32 %v957, %v984
        %v988 = vmul.f32 %v962, %v984
        %v989 = vmul.f32 %v967, %v984
        %v990 = vmul.f32 %v972, %v984
        %v991 = vmul.f32 %v977, %v984
        %v992 = vmul.f32 %v982, %v984
        %v993 = vadd.f32 %v893, %v985
        %v994 = vadd.f32 %v894, %v986
        %v995 = vadd.f32 %v895, %v987
        %v996 = vadd.f32 %v896, %v988
        %v997 = vadd.f32 %v897, %v989
        %v998 = vadd.f32 %v898, %v990
        %v999 = vadd.f32 %v899, %v991
        %v1000 = vadd.f32 %v900, %v992
        %v1001 = vld [vmem:[#allocation4 + $0x3] sm:$0x1]
        %v1002 = vperm.slane %v1001, 0
        %v1003 = vmul.f32 %v947, %v1002
        %v1004 = vmul.f32 %v952, %v1002
        %v1005 = vmul.f32 %v957, %v1002
        %v1006 = vmul.f32 %v962, %v1002
        %v1007 = vmul.f32 %v967, %v1002
        %v1008 = vmul.f32 %v972, %v1002
        %v1009 = vmul.f32 %v977, %v1002
        %v1010 = vmul.f32 %v982, %v1002
        %v1011 = vadd.f32 %v911, %v1003
        %v1012 = vadd.f32 %v912, %v1004
        %v1013 = vadd.f32 %v913, %v1005
        %v1014 = vadd.f32 %v914, %v1006
        %v1015 = vadd.f32 %v915, %v1007
        %v1016 = vadd.f32 %v916, %v1008
        %v1017 = vadd.f32 %v917, %v1009
        %v1018 = vadd.f32 %v918, %v1010
        %v1019 = vpack.c.bf16 %v597, %v595
        %v1020 = vpack.c.bf16 %v598, %v596
        %v1021 = vpack.c.bf16 %v601, %v599
        %v1022 = vpack.c.bf16 %v602, %v600
        %v1023 = vpack.c.bf16 %v605, %v603
        %v1024 = vpack.c.bf16 %v606, %v604
        %v1025 = vpack.c.bf16 %v609, %v607
        %v1026 = vpack.c.bf16 %v610, %v608
        %v1027 = vld [vmem:[%s5] sm:$0xf]
        %v1028 = vld [vmem:[%s5 + $0x4] sm:$0xf]
        %v1029 = vld [vmem:[%s5 + $0x8] sm:$0xf]
        %v1030 = vld [vmem:[%s5 + $0xc] sm:$0xf]
        %v1031 = vld [vmem:[%s5 + $0x10] sm:$0xf]
        %v1032 = vld [vmem:[%s5 + $0x14] sm:$0xf]
        %v1033 = vld [vmem:[%s5 + $0x18] sm:$0xf]
        %v1034 = vld [vmem:[%s5 + $0x1c] sm:$0xf]
        %v1035 = vld [vmem:[%s5 + $0x20] sm:$0xf]
        %v1036 = vld [vmem:[%s5 + $0x24] sm:$0xf]
        %v1037 = vld [vmem:[%s5 + $0x28] sm:$0xf]
        %v1038 = vld [vmem:[%s5 + $0x2c] sm:$0xf]
        %v1039 = vld [vmem:[%s5 + $0x30] sm:$0xf]
        %v1040 = vld [vmem:[%s5 + $0x34] sm:$0xf]
        %v1041 = vld [vmem:[%s5 + $0x38] sm:$0xf]
        %v1042 = vld [vmem:[%s5 + $0x3c] sm:$0xf]
        %v1043 = vld [vmem:[%s5 + $0x40] sm:$0xf]
        %v1044 = vld [vmem:[%s5 + $0x44] sm:$0xf]
        %v1045 = vld [vmem:[%s5 + $0x48] sm:$0xf]
        %v1046 = vld [vmem:[%s5 + $0x4c] sm:$0xf]
        %v1047 = vld [vmem:[%s5 + $0x50] sm:$0xf]
        %v1048 = vld [vmem:[%s5 + $0x54] sm:$0xf]
        %v1049 = vld [vmem:[%s5 + $0x58] sm:$0xf]
        %v1050 = vld [vmem:[%s5 + $0x5c] sm:$0xf]
        %v1051 = vld [vmem:[%s5 + $0x60] sm:$0xf]
        %v1052 = vld [vmem:[%s5 + $0x64] sm:$0xf]
        %v1053 = vld [vmem:[%s5 + $0x68] sm:$0xf]
        %v1054 = vld [vmem:[%s5 + $0x6c] sm:$0xf]
        %v1055 = vld [vmem:[%s5 + $0x70] sm:$0xf]
        %v1056 = vld [vmem:[%s5 + $0x74] sm:$0xf]
        %v1057 = vld [vmem:[%s5 + $0x78] sm:$0xf]
        %v1058 = vld [vmem:[%s5 + $0x7c] sm:$0xf]
        %v1091 = vunpack.c.l.b16 %v1027
        %v1092 = vunpack.c.l.b16 %v1028
        %v1093 = vunpack.c.l.b16 %v1029
        %v1094 = vunpack.c.l.b16 %v1030
        %v1095 = vunpack.c.l.b16 %v1031
        %v1096 = vunpack.c.l.b16 %v1032
        %v1097 = vunpack.c.l.b16 %v1033
        %v1098 = vunpack.c.l.b16 %v1034
        %v1099 = vunpack.c.l.b16 %v1035
        %v1100 = vunpack.c.l.b16 %v1036
        %v1101 = vunpack.c.l.b16 %v1037
        %v1102 = vunpack.c.l.b16 %v1038
        %v1103 = vunpack.c.l.b16 %v1039
        %v1104 = vunpack.c.l.b16 %v1040
        %v1105 = vunpack.c.l.b16 %v1041
        %v1106 = vunpack.c.l.b16 %v1042
        %v1107 = vunpack.c.l.b16 %v1043
        %v1108 = vunpack.c.l.b16 %v1044
        %v1109 = vunpack.c.l.b16 %v1045
        %v1110 = vunpack.c.l.b16 %v1046
        %v1111 = vunpack.c.l.b16 %v1047
        %v1112 = vunpack.c.l.b16 %v1048
        %v1113 = vunpack.c.l.b16 %v1049
        %v1114 = vunpack.c.l.b16 %v1050
        %v1115 = vunpack.c.l.b16 %v1051
        %v1116 = vunpack.c.l.b16 %v1052
        %v1117 = vunpack.c.l.b16 %v1053
        %v1118 = vunpack.c.l.b16 %v1054
        %v1119 = vunpack.c.l.b16 %v1055
        %v1120 = vunpack.c.l.b16 %v1056
        %v1121 = vunpack.c.l.b16 %v1057
        %v1122 = vunpack.c.l.b16 %v1058
        %v1123 = vpack.c.b16 %v1092, %v1091
        %v1124 = vpack.c.b16 %v1094, %v1093
        %v1125 = vpack.c.b16 %v1096, %v1095
        %v1126 = vpack.c.b16 %v1098, %v1097
        %v1127 = vpack.c.b16 %v1100, %v1099
        %v1128 = vpack.c.b16 %v1102, %v1101
        %v1129 = vpack.c.b16 %v1104, %v1103
        %v1130 = vpack.c.b16 %v1106, %v1105
        %v1131 = vpack.c.b16 %v1108, %v1107
        %v1132 = vpack.c.b16 %v1110, %v1109
        %v1133 = vpack.c.b16 %v1112, %v1111
        %v1134 = vpack.c.b16 %v1114, %v1113
        %v1135 = vpack.c.b16 %v1116, %v1115
        %v1136 = vpack.c.b16 %v1118, %v1117
        %v1137 = vpack.c.b16 %v1120, %v1119
        %v1138 = vpack.c.b16 %v1122, %v1121
        %1155 = vmatpush.bf16.msra.mxu0 %v1130
        %1156 = vmatpush.bf16.msra.mxu0 %v1129
        %1157 = vmatpush.bf16.msra.mxu0 %v1128
        %1158 = vmatpush.bf16.msra.mxu0 %v1127
        %1159 = vmatpush.bf16.msra.mxu0 %v1126
        %1160 = vmatpush.bf16.msra.mxu0 %v1125
        %1161 = vmatpush.bf16.msra.mxu0 %v1124
        %1162 = vmatpush.bf16.msra.mxu0 %v1123
        %1163 = vmatmul.bf16.gmra.mxu0 %v1019
        %v1164 = vpop.f32.mrf.mxu0
        %v1165 = vadd.f32 %v993, %v1164
        %v1166 = vpop.f32.mrf.mxu0
        %v1167 = vadd.f32 %v994, %v1166
        %1168 = vmatmul.bf16.gmra.mxu0 %v1021
        %v1169 = vpop.f32.mrf.mxu0
        %v1170 = vadd.f32 %v995, %v1169
        %v1171 = vpop.f32.mrf.mxu0
        %v1172 = vadd.f32 %v996, %v1171
        %1173 = vmatmul.bf16.gmra.mxu0 %v1023
        %v1174 = vpop.f32.mrf.mxu0
        %v1175 = vadd.f32 %v997, %v1174
        %v1176 = vpop.f32.mrf.mxu0
        %v1177 = vadd.f32 %v998, %v1176
        %1178 = vmatmul.bf16.gmra.mxu0 %v1025
        %v1179 = vpop.f32.mrf.mxu0
        %v1180 = vadd.f32 %v999, %v1179
        %v1181 = vpop.f32.mrf.mxu0
        %v1182 = vadd.f32 %v1000, %v1181
        %1183 = vdwg.mxu0
        %1184 = vmatpush.bf16.msra.mxu0 %v1138
        %1185 = vmatpush.bf16.msra.mxu0 %v1137
        %1186 = vmatpush.bf16.msra.mxu0 %v1136
        %1187 = vmatpush.bf16.msra.mxu0 %v1135
        %1188 = vmatpush.bf16.msra.mxu0 %v1134
        %1189 = vmatpush.bf16.msra.mxu0 %v1133
        %1190 = vmatpush.bf16.msra.mxu0 %v1132
        %1191 = vmatpush.bf16.msra.mxu0 %v1131
        %1192 = vmatmul.bf16.gmra.mxu0 %v1020
        %v1193 = vpop.f32.mrf.mxu0
        %v1194 = vadd.f32 %v1165, %v1193
        %v1195 = vpop.f32.mrf.mxu0
        %v1196 = vadd.f32 %v1167, %v1195
        %1197 = vmatmul.bf16.gmra.mxu0 %v1022
        %v1198 = vpop.f32.mrf.mxu0
        %v1199 = vadd.f32 %v1170, %v1198
        %v1200 = vpop.f32.mrf.mxu0
        %v1201 = vadd.f32 %v1172, %v1200
        %1202 = vmatmul.bf16.gmra.mxu0 %v1024
        %v1203 = vpop.f32.mrf.mxu0
        %v1204 = vadd.f32 %v1175, %v1203
        %v1205 = vpop.f32.mrf.mxu0
        %v1206 = vadd.f32 %v1177, %v1205
        %1207 = vmatmul.bf16.gmra.mxu0 %v1026
        %v1208 = vpop.f32.mrf.mxu0
        %v1209 = vadd.f32 %v1180, %v1208
        %v1210 = vpop.f32.mrf.mxu0
        %v1211 = vadd.f32 %v1182, %v1210
        %1212 = vdwg.mxu0
        %v1213 = vld [vmem:[#allocation6] sm:$0x1]
        %v1215 = vperm.slane %v1213, 0
        %v1217 = vadd.f32 %v1194, %v1215
        %v1218 = vadd.f32 %v1196, %v1215
        %v1219 = vadd.f32 %v1199, %v1215
        %v1220 = vadd.f32 %v1201, %v1215
        %v1221 = vadd.f32 %v1204, %v1215
        %v1222 = vadd.f32 %v1206, %v1215
        %v1223 = vadd.f32 %v1209, %v1215
        %v1224 = vadd.f32 %v1211, %v1215
        %v1225 = vmax.f32 %v1217, 0.0
        %v1226 = vmax.f32 %v1218, 0.0
        %v1227 = vmax.f32 %v1219, 0.0
        %v1228 = vmax.f32 %v1220, 0.0
        %v1229 = vmax.f32 %v1221, 0.0
        %v1230 = vmax.f32 %v1222, 0.0
        %v1231 = vmax.f32 %v1223, 0.0
        %v1232 = vmax.f32 %v1224, 0.0
        %v1233 = vpack.c.bf16 %v1226, %v1225
        %v1234 = vpack.c.bf16 %v1228, %v1227
        %v1235 = vpack.c.bf16 %v1230, %v1229
        %v1236 = vpack.c.bf16 %v1232, %v1231
        %v1237 = vld [vmem:[%s7] sm:$0xf]
        %v1238 = vld [vmem:[%s7 + $0x4] sm:$0xf]
        %v1239 = vld [vmem:[%s7 + $0x8] sm:$0xf]
        %v1240 = vld [vmem:[%s7 + $0xc] sm:$0xf]
        %v1241 = vld [vmem:[%s7 + $0x10] sm:$0xf]
        %v1242 = vld [vmem:[%s7 + $0x14] sm:$0xf]
        %v1243 = vld [vmem:[%s7 + $0x18] sm:$0xf]
        %v1244 = vld [vmem:[%s7 + $0x1c] sm:$0xf]
        %v1245 = vld [vmem:[%s7 + $0x20] sm:$0xf]
        %v1246 = vld [vmem:[%s7 + $0x24] sm:$0xf]
        %v1247 = vld [vmem:[%s7 + $0x28] sm:$0xf]
        %v1248 = vld [vmem:[%s7 + $0x2c] sm:$0xf]
        %v1249 = vld [vmem:[%s7 + $0x30] sm:$0xf]
        %v1250 = vld [vmem:[%s7 + $0x34] sm:$0xf]
        %v1251 = vld [vmem:[%s7 + $0x38] sm:$0xf]
        %v1252 = vld [vmem:[%s7 + $0x3c] sm:$0xf]
        %v1253 = vld [vmem:[#allocation7] sm:$0x1]
        %v1255 = vperm.slane %v1253, 0
        %v1273 = vunpack.c.l.b16 %v1237
        %v1274 = vunpack.c.l.b16 %v1238
        %v1275 = vunpack.c.l.b16 %v1239
        %v1276 = vunpack.c.l.b16 %v1240
        %v1277 = vunpack.c.l.b16 %v1241
        %v1278 = vunpack.c.l.b16 %v1242
        %v1279 = vunpack.c.l.b16 %v1243
        %v1280 = vunpack.c.l.b16 %v1244
        %v1281 = vunpack.c.l.b16 %v1245
        %v1282 = vunpack.c.l.b16 %v1246
        %v1283 = vunpack.c.l.b16 %v1247
        %v1284 = vunpack.c.l.b16 %v1248
        %v1285 = vunpack.c.l.b16 %v1249
        %v1286 = vunpack.c.l.b16 %v1250
        %v1287 = vunpack.c.l.b16 %v1251
        %v1288 = vunpack.c.l.b16 %v1252
        %v1289 = vpack.c.b16 %v1274, %v1273
        %v1290 = vpack.c.b16 %v1276, %v1275
        %v1291 = vpack.c.b16 %v1278, %v1277
        %v1292 = vpack.c.b16 %v1280, %v1279
        %v1293 = vpack.c.b16 %v1282, %v1281
        %v1294 = vpack.c.b16 %v1284, %v1283
        %v1295 = vpack.c.b16 %v1286, %v1285
        %v1296 = vpack.c.b16 %v1288, %v1287
        %1305 = vmatpush.bf16.msra.mxu0 %v1296
        %1306 = vmatpush.bf16.msra.mxu0 %v1295
        %1307 = vmatpush.bf16.msra.mxu0 %v1294
        %1308 = vmatpush.bf16.msra.mxu0 %v1293
        %1309 = vmatpush.bf16.msra.mxu0 %v1292
        %1310 = vmatpush.bf16.msra.mxu0 %v1291
        %1311 = vmatpush.bf16.msra.mxu0 %v1290
        %1312 = vmatpush.bf16.msra.mxu0 %v1289
        %1313 = vmatmul.bf16.gmra.mxu0 %v1233
        %v1314 = vpop.f32.mrf.mxu0
        %v1315 = vadd.f32 %v1255, %v1314
        %v1316 = vpop.f32.mrf.mxu0
        %v1317 = vadd.f32 %v1255, %v1316
        %1318 = vmatmul.bf16.gmra.mxu0 %v1234
        %v1319 = vpop.f32.mrf.mxu0
        %v1320 = vadd.f32 %v1255, %v1319
        %v1321 = vpop.f32.mrf.mxu0
        %v1322 = vadd.f32 %v1255, %v1321
        %1323 = vmatmul.bf16.gmra.mxu0 %v1235
        %v1324 = vpop.f32.mrf.mxu0
        %v1325 = vadd.f32 %v1255, %v1324
        %v1326 = vpop.f32.mrf.mxu0
        %v1327 = vadd.f32 %v1255, %v1326
        %1328 = vmatmul.bf16.gmra.mxu0 %v1236
        %v1329 = vpop.f32.mrf.mxu0
        %v1330 = vadd.f32 %v1255, %v1329
        %v1331 = vpop.f32.mrf.mxu0
        %v1332 = vadd.f32 %v1255, %v1331
        %1333 = vdwg.mxu0
        %v1334 = vmul.f32 %v1315, 1.442695
        %v1335 = vpow.pop %v1334
        %v1336 = vmul.f32 %v1317, 1.442695
        %v1337 = vpow.pop %v1336
        %v1338 = vmul.f32 %v1320, 1.442695
        %v1339 = vpow.pop %v1338
        %v1340 = vmul.f32 %v1322, 1.442695
        %v1341 = vpow.pop %v1340
        %v1342 = vmul.f32 %v1325, 1.442695
        %v1343 = vpow.pop %v1342
        %v1344 = vmul.f32 %v1327, 1.442695
        %v1345 = vpow.pop %v1344
        %v1346 = vmul.f32 %v1330, 1.442695
        %v1347 = vpow.pop %v1346
        %v1348 = vmul.f32 %v1332, 1.442695
        %v1349 = vpow.pop %v1348
        %v1350 = vadd.f32 %v1335, 0.0001
        %v1351 = vadd.f32 %v1337, 0.0001
        %v1352 = vadd.f32 %v1339, 0.0001
        %v1353 = vadd.f32 %v1341, 0.0001
        %v1354 = vadd.f32 %v1343, 0.0001
        %v1355 = vadd.f32 %v1345, 0.0001
        %v1356 = vadd.f32 %v1347, 0.0001
        %v1357 = vadd.f32 %v1349, 0.0001
        %v1358 = vrsqrt.pop %v1350
        %v1359 = vmul.f32 %v1358, %v1350
        %v1360 = vmul.f32 %v1359, %v1358
        %v1361 = vmul.f32 0.5, %v1360
        %v1362 = vsub.f32 1.5, %v1361
        %v1363 = vmul.f32 %v1358, %v1362
        %v1364 = vmul.f32 %v1350, %v1363
        %vm1365 = vcmp.eq.f32.partialorder %v1350, inf
        %v1366 = vsel %vm1365, %v1350, %v1364
        %vm1367 = vcmp.eq.f32.partialorder %v1350, 0.0
        %v1368 = vand.u32 %v1350, 2147483648
        %v1369 = vsel %vm1367, %v1368, %v1366
        %v1370 = vrsqrt.pop %v1351
        %v1371 = vmul.f32 %v1370, %v1351
        %v1372 = vmul.f32 %v1371, %v1370
        %v1373 = vmul.f32 0.5, %v1372
        %v1374 = vsub.f32 1.5, %v1373
        %v1375 = vmul.f32 %v1370, %v1374
        %v1376 = vmul.f32 %v1351, %v1375
        %vm1377 = vcmp.eq.f32.partialorder %v1351, inf
        %v1378 = vsel %vm1377, %v1351, %v1376
        %vm1379 = vcmp.eq.f32.partialorder %v1351, 0.0
        %v1380 = vand.u32 %v1351, 2147483648
        %v1381 = vsel %vm1379, %v1380, %v1378
        %v1382 = vrsqrt.pop %v1352
        %v1383 = vmul.f32 %v1382, %v1352
        %v1384 = vmul.f32 %v1383, %v1382
        %v1385 = vmul.f32 0.5, %v1384
        %v1386 = vsub.f32 1.5, %v1385
        %v1387 = vmul.f32 %v1382, %v1386
        %v1388 = vmul.f32 %v1352, %v1387
        %vm1389 = vcmp.eq.f32.partialorder %v1352, inf
        %v1390 = vsel %vm1389, %v1352, %v1388
        %vm1391 = vcmp.eq.f32.partialorder %v1352, 0.0
        %v1392 = vand.u32 %v1352, 2147483648
        %v1393 = vsel %vm1391, %v1392, %v1390
        %v1394 = vrsqrt.pop %v1353
        %v1395 = vmul.f32 %v1394, %v1353
        %v1396 = vmul.f32 %v1395, %v1394
        %v1397 = vmul.f32 0.5, %v1396
        %v1398 = vsub.f32 1.5, %v1397
        %v1399 = vmul.f32 %v1394, %v1398
        %v1400 = vmul.f32 %v1353, %v1399
        %vm1401 = vcmp.eq.f32.partialorder %v1353, inf
        %v1402 = vsel %vm1401, %v1353, %v1400
        %vm1403 = vcmp.eq.f32.partialorder %v1353, 0.0
        %v1404 = vand.u32 %v1353, 2147483648
        %v1405 = vsel %vm1403, %v1404, %v1402
        %v1406 = vrsqrt.pop %v1354
        %v1407 = vmul.f32 %v1406, %v1354
        %v1408 = vmul.f32 %v1407, %v1406
        %v1409 = vmul.f32 0.5, %v1408
        %v1410 = vsub.f32 1.5, %v1409
        %v1411 = vmul.f32 %v1406, %v1410
        %v1412 = vmul.f32 %v1354, %v1411
        %vm1413 = vcmp.eq.f32.partialorder %v1354, inf
        %v1414 = vsel %vm1413, %v1354, %v1412
        %vm1415 = vcmp.eq.f32.partialorder %v1354, 0.0
        %v1416 = vand.u32 %v1354, 2147483648
        %v1417 = vsel %vm1415, %v1416, %v1414
        %v1418 = vrsqrt.pop %v1355
        %v1419 = vmul.f32 %v1418, %v1355
        %v1420 = vmul.f32 %v1419, %v1418
        %v1421 = vmul.f32 0.5, %v1420
        %v1422 = vsub.f32 1.5, %v1421
        %v1423 = vmul.f32 %v1418, %v1422
        %v1424 = vmul.f32 %v1355, %v1423
        %vm1425 = vcmp.eq.f32.partialorder %v1355, inf
        %v1426 = vsel %vm1425, %v1355, %v1424
        %vm1427 = vcmp.eq.f32.partialorder %v1355, 0.0
        %v1428 = vand.u32 %v1355, 2147483648
        %v1429 = vsel %vm1427, %v1428, %v1426
        %v1430 = vrsqrt.pop %v1356
        %v1431 = vmul.f32 %v1430, %v1356
        %v1432 = vmul.f32 %v1431, %v1430
        %v1433 = vmul.f32 0.5, %v1432
        %v1434 = vsub.f32 1.5, %v1433
        %v1435 = vmul.f32 %v1430, %v1434
        %v1436 = vmul.f32 %v1356, %v1435
        %vm1437 = vcmp.eq.f32.partialorder %v1356, inf
        %v1438 = vsel %vm1437, %v1356, %v1436
        %vm1439 = vcmp.eq.f32.partialorder %v1356, 0.0
        %v1440 = vand.u32 %v1356, 2147483648
        %v1441 = vsel %vm1439, %v1440, %v1438
        %v1442 = vrsqrt.pop %v1357
        %v1443 = vmul.f32 %v1442, %v1357
        %v1444 = vmul.f32 %v1443, %v1442
        %v1445 = vmul.f32 0.5, %v1444
        %v1446 = vsub.f32 1.5, %v1445
        %v1447 = vmul.f32 %v1442, %v1446
        %v1448 = vmul.f32 %v1357, %v1447
        %vm1449 = vcmp.eq.f32.partialorder %v1357, inf
        %v1450 = vsel %vm1449, %v1357, %v1448
        %vm1451 = vcmp.eq.f32.partialorder %v1357, 0.0
        %v1452 = vand.u32 %v1357, 2147483648
        %v1453 = vsel %vm1451, %v1452, %v1450
        %v1454 = vld [vmem:[%s582] sm:$0xff]
        %v1455 = vld [vmem:[%s582 + $0x8] sm:$0xff]
        %v1456 = vld [vmem:[%s582 + $0x10] sm:$0xff]
        %v1457 = vld [vmem:[%s582 + $0x18] sm:$0xff]
        %v1458 = vld [vmem:[%s582 + $0x20] sm:$0xff]
        %v1459 = vld [vmem:[%s582 + $0x28] sm:$0xff]
        %v1460 = vld [vmem:[%s582 + $0x30] sm:$0xff]
        %v1461 = vld [vmem:[%s582 + $0x38] sm:$0xff]
        %1470 = vrot.lane.b32.xlu0 %v1454, 32
        %v1471 = vpop.permute.xlu0 %1470
        %1472 = vrot.lane.b32.xlu0 %v1455, 32
        %v1473 = vpop.permute.xlu0 %1472
        %1474 = vrot.lane.b32.xlu0 %v1456, 32
        %v1475 = vpop.permute.xlu0 %1474
        %1476 = vrot.lane.b32.xlu0 %v1457, 32
        %v1477 = vpop.permute.xlu0 %1476
        %1478 = vrot.lane.b32.xlu0 %v1458, 32
        %v1479 = vpop.permute.xlu0 %1478
        %1480 = vrot.lane.b32.xlu0 %v1459, 32
        %v1481 = vpop.permute.xlu0 %1480
        %1482 = vrot.lane.b32.xlu0 %v1460, 32
        %v1483 = vpop.permute.xlu0 %1482
        %1484 = vrot.lane.b32.xlu0 %v1461, 32
        %v1485 = vpop.permute.xlu0 %1484
        %v1494 = vmul.f32 %v1369, %v1471
        %v1495 = vmul.f32 %v1381, %v1473
        %v1496 = vmul.f32 %v1393, %v1475
        %v1497 = vmul.f32 %v1405, %v1477
        %v1498 = vmul.f32 %v1417, %v1479
        %v1499 = vmul.f32 %v1429, %v1481
        %v1500 = vmul.f32 %v1441, %v1483
        %v1501 = vmul.f32 %v1453, %v1485
        %1510 = vrot.lane.b32.xlu0 %v1494, 96
        %v1511 = vpop.permute.xlu0 %1510
        %1512 = vrot.lane.b32.xlu0 %v1495, 96
        %v1513 = vpop.permute.xlu0 %1512
        %1514 = vrot.lane.b32.xlu0 %v1496, 96
        %v1515 = vpop.permute.xlu0 %1514
        %1516 = vrot.lane.b32.xlu0 %v1497, 96
        %v1517 = vpop.permute.xlu0 %1516
        %1518 = vrot.lane.b32.xlu0 %v1498, 96
        %v1519 = vpop.permute.xlu0 %1518
        %1520 = vrot.lane.b32.xlu0 %v1499, 96
        %v1521 = vpop.permute.xlu0 %1520
        %1522 = vrot.lane.b32.xlu0 %v1500, 96
        %v1523 = vpop.permute.xlu0 %1522
        %1524 = vrot.lane.b32.xlu0 %v1501, 96
        %v1525 = vpop.permute.xlu0 %1524
        %v1534 = vadd.f32 %v1315, %v1511
        %v1535 = vadd.f32 %v1317, %v1513
        %v1536 = vadd.f32 %v1320, %v1515
        %v1537 = vadd.f32 %v1322, %v1517
        %v1538 = vadd.f32 %v1325, %v1519
        %v1539 = vadd.f32 %v1327, %v1521
        %v1540 = vadd.f32 %v1330, %v1523
        %v1541 = vadd.f32 %v1332, %v1525
        %vm1542 = vcmask 261120
        %1543 = vst.msk [vmem:[%s588] sm:$0xff] %vm1542, %v1534
        %1544 = vst.msk [vmem:[%s588 + $0x8] sm:$0xff] %vm1542, %v1535
        %1545 = vst.msk [vmem:[%s588 + $0x10] sm:$0xff] %vm1542, %v1536
        %1546 = vst.msk [vmem:[%s588 + $0x18] sm:$0xff] %vm1542, %v1537
        %1547 = vst.msk [vmem:[%s588 + $0x20] sm:$0xff] %vm1542, %v1538
        %1548 = vst.msk [vmem:[%s588 + $0x28] sm:$0xff] %vm1542, %v1539
        %1549 = vst.msk [vmem:[%s588 + $0x30] sm:$0xff] %vm1542, %v1540
        %1550 = vst.msk [vmem:[%s588 + $0x38] sm:$0xff] %vm1542, %v1541
        %v1551 = vpack.c.bf16 %v1535, %v1534
        %v1552 = vpack.c.bf16 %v1537, %v1536
        %v1553 = vpack.c.bf16 %v1539, %v1538
        %v1554 = vpack.c.bf16 %v1541, %v1540
        %v1555 = vld [vmem:[#allocation9] sm:$0xf]
        %v1556 = vld [vmem:[#allocation9 + $0x4] sm:$0xf]
        %v1557 = vld [vmem:[#allocation9 + $0x8] sm:$0xf]
        %v1558 = vld [vmem:[#allocation9 + $0xc] sm:$0xf]
        %v1563 = vunpack.c.l.b16 %v1555
        %v1564 = vunpack.c.l.b16 %v1556
        %v1565 = vunpack.c.l.b16 %v1557
        %v1566 = vunpack.c.l.b16 %v1558
        %v1567 = vpack.c.b16 %v1564, %v1563
        %v1568 = vpack.c.b16 %v1566, %v1565
        %v1572 = vsel %vm1542, %v1551, 0
        %v1575 = vsel %vm1542, %v1552, 0
        %v1578 = vsel %vm1542, %v1553, 0
        %v1581 = vsel %vm1542, %v1554, 0
        %1583 = vmatpush.bf16.msra.mxu0 0
        %1584 = vmatpush.bf16.msra.mxu0 0
        %1585 = vmatpush.bf16.msra.mxu0 0
        %1586 = vmatpush.bf16.msra.mxu0 0
        %1587 = vmatpush.bf16.msra.mxu0 0
        %1588 = vmatpush.bf16.msra.mxu0 0
        %1589 = vmatpush.bf16.msra.mxu0 %v1568
        %1590 = vmatpush.bf16.msra.mxu0 %v1567
        %1591 = vmatmul.bf16.gmra.mxu0 %v1572
        %v1592 = vpop.f32.mrf.mxu0
        %v1593 = vadd.f32 %v1011, %v1592
        %v1594 = vpop.f32.mrf.mxu0
        %v1595 = vadd.f32 %v1012, %v1594
        %1596 = vmatmul.bf16.gmra.mxu0 %v1575
        %v1597 = vpop.f32.mrf.mxu0
        %v1598 = vadd.f32 %v1013, %v1597
        %v1599 = vpop.f32.mrf.mxu0
        %v1600 = vadd.f32 %v1014, %v1599
        %1601 = vmatmul.bf16.gmra.mxu0 %v1578
        %v1602 = vpop.f32.mrf.mxu0
        %v1603 = vadd.f32 %v1015, %v1602
        %v1604 = vpop.f32.mrf.mxu0
        %v1605 = vadd.f32 %v1016, %v1604
        %1606 = vmatmul.bf16.gmra.mxu0 %v1581
        %v1607 = vpop.f32.mrf.mxu0
        %v1608 = vadd.f32 %v1017, %v1607
        %v1609 = vpop.f32.mrf.mxu0
        %v1610 = vadd.f32 %v1018, %v1609
        %1611 = vdwg.mxu0
        %v1612 = vmax.f32 %v1593, 0.0
        %v1613 = vmax.f32 %v1595, 0.0
        %v1614 = vmax.f32 %v1598, 0.0
        %v1615 = vmax.f32 %v1600, 0.0
        %v1616 = vmax.f32 %v1603, 0.0
        %v1617 = vmax.f32 %v1605, 0.0
        %v1618 = vmax.f32 %v1608, 0.0
        %v1619 = vmax.f32 %v1610, 0.0
        %v1620 = vpack.c.bf16 %v1613, %v1612
        %v1621 = vpack.c.bf16 %v1615, %v1614
        %v1622 = vpack.c.bf16 %v1617, %v1616
        %v1623 = vpack.c.bf16 %v1619, %v1618
        %v1624 = vld [vmem:[#allocation10] sm:$0xff]
        %v1625 = vld [vmem:[#allocation10 + $0x8] sm:$0xff]
        %v1626 = vld [vmem:[#allocation10 + $0x10] sm:$0xff]
        %v1627 = vld [vmem:[#allocation10 + $0x18] sm:$0xff]
        %v1628 = vld [vmem:[#allocation10 + $0x20] sm:$0xff]
        %v1629 = vld [vmem:[#allocation10 + $0x28] sm:$0xff]
        %v1630 = vld [vmem:[#allocation10 + $0x30] sm:$0xff]
        %v1631 = vld [vmem:[#allocation10 + $0x38] sm:$0xff]
        %v1632 = vld [vmem:[#allocation10 + $0x40] sm:$0xff]
        %v1633 = vld [vmem:[#allocation10 + $0x48] sm:$0xff]
        %v1634 = vld [vmem:[#allocation10 + $0x50] sm:$0xff]
        %v1635 = vld [vmem:[#allocation10 + $0x58] sm:$0xff]
        %v1636 = vld [vmem:[#allocation10 + $0x60] sm:$0xff]
        %v1637 = vld [vmem:[#allocation10 + $0x68] sm:$0xff]
        %v1638 = vld [vmem:[#allocation10 + $0x70] sm:$0xff]
        %v1639 = vld [vmem:[#allocation10 + $0x78] sm:$0xff]
        %v1640 = vld [vmem:[%s11] sm:$0x3]
        %v1642 = vperm.slane %v1640, 0
        %v1643 = vperm.slane %v1640, 1
        %v1662 = vunpack.c.l.b16 %v1624
        %v1663 = vunpack.c.h.b16 %v1624
        %v1664 = vunpack.c.l.b16 %v1625
        %v1665 = vunpack.c.h.b16 %v1625
        %v1666 = vunpack.c.l.b16 %v1626
        %v1667 = vunpack.c.h.b16 %v1626
        %v1668 = vunpack.c.l.b16 %v1627
        %v1669 = vunpack.c.h.b16 %v1627
        %v1670 = vunpack.c.l.b16 %v1628
        %v1671 = vunpack.c.h.b16 %v1628
        %v1672 = vunpack.c.l.b16 %v1629
        %v1673 = vunpack.c.h.b16 %v1629
        %v1674 = vunpack.c.l.b16 %v1630
        %v1675 = vunpack.c.h.b16 %v1630
        %v1676 = vunpack.c.l.b16 %v1631
        %v1677 = vunpack.c.h.b16 %v1631
        %v1678 = vunpack.c.l.b16 %v1632
        %v1679 = vunpack.c.h.b16 %v1632
        %v1680 = vunpack.c.l.b16 %v1633
        %v1681 = vunpack.c.h.b16 %v1633
        %v1682 = vunpack.c.l.b16 %v1634
        %v1683 = vunpack.c.h.b16 %v1634
        %v1684 = vunpack.c.l.b16 %v1635
        %v1685 = vunpack.c.h.b16 %v1635
        %v1686 = vunpack.c.l.b16 %v1636
        %v1687 = vunpack.c.h.b16 %v1636
        %v1688 = vunpack.c.l.b16 %v1637
        %v1689 = vunpack.c.h.b16 %v1637
        %v1690 = vunpack.c.l.b16 %v1638
        %v1691 = vunpack.c.h.b16 %v1638
        %v1692 = vunpack.c.l.b16 %v1639
        %v1693 = vunpack.c.h.b16 %v1639
        %v1694 = vpack.c.b16 %v1664, %v1662
        %v1695 = vpack.c.b16 %v1665, %v1663
        %v1696 = vpack.c.b16 %v1668, %v1666
        %v1697 = vpack.c.b16 %v1669, %v1667
        %v1698 = vpack.c.b16 %v1672, %v1670
        %v1699 = vpack.c.b16 %v1673, %v1671
        %v1700 = vpack.c.b16 %v1676, %v1674
        %v1701 = vpack.c.b16 %v1677, %v1675
        %v1702 = vpack.c.b16 %v1680, %v1678
        %v1703 = vpack.c.b16 %v1681, %v1679
        %v1704 = vpack.c.b16 %v1684, %v1682
        %v1705 = vpack.c.b16 %v1685, %v1683
        %v1706 = vpack.c.b16 %v1688, %v1686
        %v1707 = vpack.c.b16 %v1689, %v1687
        %v1708 = vpack.c.b16 %v1692, %v1690
        %v1709 = vpack.c.b16 %v1693, %v1691
        %1726 = vmatpush.bf16.msra.mxu0 %v1708
        %1727 = vmatpush.bf16.msra.mxu0 %v1706
        %1728 = vmatpush.bf16.msra.mxu0 %v1704
        %1729 = vmatpush.bf16.msra.mxu0 %v1702
        %1730 = vmatpush.bf16.msra.mxu0 %v1700
        %1731 = vmatpush.bf16.msra.mxu0 %v1698
        %1732 = vmatpush.bf16.msra.mxu0 %v1696
        %1733 = vmatpush.bf16.msra.mxu0 %v1694
        %1734 = vmatmul.bf16.gmra.mxu0 %v1620
        %v1735 = vpop.f32.mrf.mxu0
        %v1736 = vadd.f32 %v1642, %v1735
        %v1737 = vpop.f32.mrf.mxu0
        %v1738 = vadd.f32 %v1642, %v1737
        %1739 = vmatmul.bf16.gmra.mxu0 %v1621
        %v1740 = vpop.f32.mrf.mxu0
        %v1741 = vadd.f32 %v1642, %v1740
        %v1742 = vpop.f32.mrf.mxu0
        %v1743 = vadd.f32 %v1642, %v1742
        %1744 = vmatmul.bf16.gmra.mxu0 %v1622
        %v1745 = vpop.f32.mrf.mxu0
        %v1746 = vadd.f32 %v1642, %v1745
        %v1747 = vpop.f32.mrf.mxu0
        %v1748 = vadd.f32 %v1642, %v1747
        %1749 = vmatmul.bf16.gmra.mxu0 %v1623
        %v1750 = vpop.f32.mrf.mxu0
        %v1751 = vadd.f32 %v1642, %v1750
        %v1752 = vpop.f32.mrf.mxu0
        %v1753 = vadd.f32 %v1642, %v1752
        %1754 = vdwg.mxu0
        %1755 = vmatpush.bf16.msra.mxu0 %v1709
        %1756 = vmatpush.bf16.msra.mxu0 %v1707
        %1757 = vmatpush.bf16.msra.mxu0 %v1705
        %1758 = vmatpush.bf16.msra.mxu0 %v1703
        %1759 = vmatpush.bf16.msra.mxu0 %v1701
        %1760 = vmatpush.bf16.msra.mxu0 %v1699
        %1761 = vmatpush.bf16.msra.mxu0 %v1697
        %1762 = vmatpush.bf16.msra.mxu0 %v1695
        %1763 = vmatmul.bf16.gmra.mxu0 %v1620
        %v1764 = vpop.f32.mrf.mxu0
        %v1765 = vadd.f32 %v1643, %v1764
        %v1766 = vpop.f32.mrf.mxu0
        %v1767 = vadd.f32 %v1643, %v1766
        %1768 = vmatmul.bf16.gmra.mxu0 %v1621
        %v1769 = vpop.f32.mrf.mxu0
        %v1770 = vadd.f32 %v1643, %v1769
        %v1771 = vpop.f32.mrf.mxu0
        %v1772 = vadd.f32 %v1643, %v1771
        %1773 = vmatmul.bf16.gmra.mxu0 %v1622
        %v1774 = vpop.f32.mrf.mxu0
        %v1775 = vadd.f32 %v1643, %v1774
        %v1776 = vpop.f32.mrf.mxu0
        %v1777 = vadd.f32 %v1643, %v1776
        %1778 = vmatmul.bf16.gmra.mxu0 %v1623
        %v1779 = vpop.f32.mrf.mxu0
        %v1780 = vadd.f32 %v1643, %v1779
        %v1781 = vpop.f32.mrf.mxu0
        %v1782 = vadd.f32 %v1643, %v1781
        %1783 = vdwg.mxu0
        %v1784 = vmax.f32 %v1736, 0.0
        %v1785 = vmax.f32 %v1765, 0.0
        %v1786 = vmax.f32 %v1738, 0.0
        %v1787 = vmax.f32 %v1767, 0.0
        %v1788 = vmax.f32 %v1741, 0.0
        %v1789 = vmax.f32 %v1770, 0.0
        %v1790 = vmax.f32 %v1743, 0.0
        %v1791 = vmax.f32 %v1772, 0.0
        %v1792 = vmax.f32 %v1746, 0.0
        %v1793 = vmax.f32 %v1775, 0.0
        %v1794 = vmax.f32 %v1748, 0.0
        %v1795 = vmax.f32 %v1777, 0.0
        %v1796 = vmax.f32 %v1751, 0.0
        %v1797 = vmax.f32 %v1780, 0.0
        %v1798 = vmax.f32 %v1753, 0.0
        %v1799 = vmax.f32 %v1782, 0.0
        %v1800 = vsub.f32 %v1784, %v595
        %v1801 = vsub.f32 %v1785, %v596
        %v1802 = vsub.f32 %v1786, %v597
        %v1803 = vsub.f32 %v1787, %v598
        %v1804 = vsub.f32 %v1788, %v599
        %v1805 = vsub.f32 %v1789, %v600
        %v1806 = vsub.f32 %v1790, %v601
        %v1807 = vsub.f32 %v1791, %v602
        %v1808 = vsub.f32 %v1792, %v603
        %v1809 = vsub.f32 %v1793, %v604
        %v1810 = vsub.f32 %v1794, %v605
        %v1811 = vsub.f32 %v1795, %v606
        %v1812 = vsub.f32 %v1796, %v607
        %v1813 = vsub.f32 %v1797, %v608
        %v1814 = vsub.f32 %v1798, %v609
        %v1815 = vsub.f32 %v1799, %v610
        %v1816 = vmul.f32 %v1800, %v1800
        %v1817 = vmul.f32 %v1801, %v1801
        %v1818 = vmul.f32 %v1802, %v1802
        %v1819 = vmul.f32 %v1803, %v1803
        %v1820 = vmul.f32 %v1804, %v1804
        %v1821 = vmul.f32 %v1805, %v1805
        %v1822 = vmul.f32 %v1806, %v1806
        %v1823 = vmul.f32 %v1807, %v1807
        %v1824 = vmul.f32 %v1808, %v1808
        %v1825 = vmul.f32 %v1809, %v1809
        %v1826 = vmul.f32 %v1810, %v1810
        %v1827 = vmul.f32 %v1811, %v1811
        %v1828 = vmul.f32 %v1812, %v1812
        %v1829 = vmul.f32 %v1813, %v1813
        %v1830 = vmul.f32 %v1814, %v1814
        %v1831 = vmul.f32 %v1815, %v1815
        %v1832 = vadd.f32 %v1816, %v1817
        %1833 = vadd.xlane.f32.xlu0 %v1832
        %v1834 = vpop.xlane.xlu0 %1833
        %v1835 = vadd.f32 %v1818, %v1819
        %1836 = vadd.xlane.f32.xlu0 %v1835
        %v1837 = vpop.xlane.xlu0 %1836
        %v1838 = vadd.f32 %v1820, %v1821
        %1839 = vadd.xlane.f32.xlu0 %v1838
        %v1840 = vpop.xlane.xlu0 %1839
        %v1841 = vadd.f32 %v1822, %v1823
        %1842 = vadd.xlane.f32.xlu0 %v1841
        %v1843 = vpop.xlane.xlu0 %1842
        %v1844 = vadd.f32 %v1824, %v1825
        %1845 = vadd.xlane.f32.xlu0 %v1844
        %v1846 = vpop.xlane.xlu0 %1845
        %v1847 = vadd.f32 %v1826, %v1827
        %1848 = vadd.xlane.f32.xlu0 %v1847
        %v1849 = vpop.xlane.xlu0 %1848
        %v1850 = vadd.f32 %v1828, %v1829
        %1851 = vadd.xlane.f32.xlu0 %v1850
        %v1852 = vpop.xlane.xlu0 %1851
        %v1853 = vadd.f32 %v1830, %v1831
        %1854 = vadd.xlane.f32.xlu0 %v1853
        %v1855 = vpop.xlane.xlu0 %1854
        %v1856 = vlog2.pop %v1350
        %v1857 = vmul.f32 %v1856, 0.6931472
        %v1858 = vlog2.pop %v1351
        %v1859 = vmul.f32 %v1858, 0.6931472
        %v1860 = vlog2.pop %v1352
        %v1861 = vmul.f32 %v1860, 0.6931472
        %v1862 = vlog2.pop %v1353
        %v1863 = vmul.f32 %v1862, 0.6931472
        %v1864 = vlog2.pop %v1354
        %v1865 = vmul.f32 %v1864, 0.6931472
        %v1866 = vlog2.pop %v1355
        %v1867 = vmul.f32 %v1866, 0.6931472
        %v1868 = vlog2.pop %v1356
        %v1869 = vmul.f32 %v1868, 0.6931472
        %v1870 = vlog2.pop %v1357
        %v1871 = vmul.f32 %v1870, 0.6931472
        %v1872 = vmul.f32 %v1857, -0.5
        %v1873 = vmul.f32 %v1859, -0.5
        %v1874 = vmul.f32 %v1861, -0.5
        %v1875 = vmul.f32 %v1863, -0.5
        %v1876 = vmul.f32 %v1865, -0.5
        %v1877 = vmul.f32 %v1867, -0.5
        %v1878 = vmul.f32 %v1869, -0.5
        %v1879 = vmul.f32 %v1871, -0.5
        %v1880 = vmul.f32 %v1315, %v1315
        %v1881 = vmul.f32 %v1317, %v1317
        %v1882 = vmul.f32 %v1320, %v1320
        %v1883 = vmul.f32 %v1322, %v1322
        %v1884 = vmul.f32 %v1325, %v1325
        %v1885 = vmul.f32 %v1327, %v1327
        %v1886 = vmul.f32 %v1330, %v1330
        %v1887 = vmul.f32 %v1332, %v1332
        %1896 = vrot.lane.b32.xlu0 %v1880, 32
        %v1897 = vpop.permute.xlu0 %1896
        %1898 = vrot.lane.b32.xlu0 %v1881, 32
        %v1899 = vpop.permute.xlu0 %1898
        %1900 = vrot.lane.b32.xlu0 %v1882, 32
        %v1901 = vpop.permute.xlu0 %1900
        %1902 = vrot.lane.b32.xlu0 %v1883, 32
        %v1903 = vpop.permute.xlu0 %1902
        %1904 = vrot.lane.b32.xlu0 %v1884, 32
        %v1905 = vpop.permute.xlu0 %1904
        %1906 = vrot.lane.b32.xlu0 %v1885, 32
        %v1907 = vpop.permute.xlu0 %1906
        %1908 = vrot.lane.b32.xlu0 %v1886, 32
        %v1909 = vpop.permute.xlu0 %1908
        %1910 = vrot.lane.b32.xlu0 %v1887, 32
        %v1911 = vpop.permute.xlu0 %1910
        %v1920 = vadd.f32 %v1350, %v1897
        %v1921 = vadd.f32 %v1351, %v1899
        %v1922 = vadd.f32 %v1352, %v1901
        %v1923 = vadd.f32 %v1353, %v1903
        %v1924 = vadd.f32 %v1354, %v1905
        %v1925 = vadd.f32 %v1355, %v1907
        %v1926 = vadd.f32 %v1356, %v1909
        %v1927 = vadd.f32 %v1357, %v1911
        %v1928 = vmul.f32 %v1920, 0.5
        %v1929 = vmul.f32 %v1921, 0.5
        %v1930 = vmul.f32 %v1922, 0.5
        %v1931 = vmul.f32 %v1923, 0.5
        %v1932 = vmul.f32 %v1924, 0.5
        %v1933 = vmul.f32 %v1925, 0.5
        %v1934 = vmul.f32 %v1926, 0.5
        %v1935 = vmul.f32 %v1927, 0.5
        %v1936 = vadd.f32 %v1872, %v1928
        %v1937 = vadd.f32 %v1873, %v1929
        %v1938 = vadd.f32 %v1874, %v1930
        %v1939 = vadd.f32 %v1875, %v1931
        %v1940 = vadd.f32 %v1876, %v1932
        %v1941 = vadd.f32 %v1877, %v1933
        %v1942 = vadd.f32 %v1878, %v1934
        %v1943 = vadd.f32 %v1879, %v1935
        %v1944 = vsub.f32 %v1936, 0.5
        %v1945 = vsub.f32 %v1937, 0.5
        %v1946 = vsub.f32 %v1938, 0.5
        %v1947 = vsub.f32 %v1939, 0.5
        %v1948 = vsub.f32 %v1940, 0.5
        %v1949 = vsub.f32 %v1941, 0.5
        %v1950 = vsub.f32 %v1942, 0.5
        %v1951 = vsub.f32 %v1943, 0.5
        %1960 = vrot.lane.b32.xlu0 %v1944, 96
        %v1961 = vpop.permute.xlu0 %1960
        %1962 = vrot.lane.b32.xlu0 %v1945, 96
        %v1963 = vpop.permute.xlu0 %1962
        %1964 = vrot.lane.b32.xlu0 %v1946, 96
        %v1965 = vpop.permute.xlu0 %1964
        %1966 = vrot.lane.b32.xlu0 %v1947, 96
        %v1967 = vpop.permute.xlu0 %1966
        %1968 = vrot.lane.b32.xlu0 %v1948, 96
        %v1969 = vpop.permute.xlu0 %1968
        %1970 = vrot.lane.b32.xlu0 %v1949, 96
        %v1971 = vpop.permute.xlu0 %1970
        %1972 = vrot.lane.b32.xlu0 %v1950, 96
        %v1973 = vpop.permute.xlu0 %1972
        %1974 = vrot.lane.b32.xlu0 %v1951, 96
        %v1975 = vpop.permute.xlu0 %1974
        %v1984 = vsel %vm1542, %v1961, 0.0
        %1985 = vadd.xlane.f32.xlu0 %v1984
        %v1986 = vpop.xlane.xlu0 %1985
        %v1987 = vsel %vm1542, %v1963, 0.0
        %1988 = vadd.xlane.f32.xlu0 %v1987
        %v1989 = vpop.xlane.xlu0 %1988
        %v1990 = vsel %vm1542, %v1965, 0.0
        %1991 = vadd.xlane.f32.xlu0 %v1990
        %v1992 = vpop.xlane.xlu0 %1991
        %v1993 = vsel %vm1542, %v1967, 0.0
        %1994 = vadd.xlane.f32.xlu0 %v1993
        %v1995 = vpop.xlane.xlu0 %1994
        %v1996 = vsel %vm1542, %v1969, 0.0
        %1997 = vadd.xlane.f32.xlu0 %v1996
        %v1998 = vpop.xlane.xlu0 %1997
        %v1999 = vsel %vm1542, %v1971, 0.0
        %2000 = vadd.xlane.f32.xlu0 %v1999
        %v2001 = vpop.xlane.xlu0 %2000
        %v2002 = vsel %vm1542, %v1973, 0.0
        %2003 = vadd.xlane.f32.xlu0 %v2002
        %v2004 = vpop.xlane.xlu0 %2003
        %v2005 = vsel %vm1542, %v1975, 0.0
        %2006 = vadd.xlane.f32.xlu0 %v2005
        %v2007 = vpop.xlane.xlu0 %2006
        %vm2008 = vcmask 7168
        %v2009 = vsel %vm2008, %v1834, %v1986
        %v2010 = vsel %vm2008, %v1837, %v1989
        %v2011 = vsel %vm2008, %v1840, %v1992
        %v2012 = vsel %vm2008, %v1843, %v1995
        %v2013 = vsel %vm2008, %v1846, %v1998
        %v2014 = vsel %vm2008, %v1849, %v2001
        %v2015 = vsel %vm2008, %v1852, %v2004
        %v2016 = vsel %vm2008, %v1855, %v2007
        %vm2017 = vcmask 15360
        %v2018 = vsel %vm2017, %v2009, 0.0
        %v2019 = vsel %vm2017, %v2010, 0.0
        %v2020 = vadd.f32 %v2018, %v2019
        %v2021 = vsel %vm2017, %v2011, 0.0
        %v2022 = vadd.f32 %v2020, %v2021
        %v2023 = vsel %vm2017, %v2012, 0.0
        %v2024 = vadd.f32 %v2022, %v2023
        %v2025 = vsel %vm2017, %v2013, 0.0
        %v2026 = vadd.f32 %v2024, %v2025
        %v2027 = vsel %vm2017, %v2014, 0.0
        %v2028 = vadd.f32 %v2026, %v2027
        %v2029 = vsel %vm2017, %v2015, 0.0
        %v2030 = vadd.f32 %v2028, %v2029
        %v2031 = vsel %vm2017, %v2016, 0.0
        %v2032 = vadd.f32 %v2030, %v2031
        %v2033 = vrot.slane %v2032, 4
        %v2034 = vadd.f32 %v2032, %v2033
        %v2035 = vrot.slane %v2034, 2
        %v2036 = vadd.f32 %v2034, %v2035
        %v2037 = vrot.slane %v2036, 1
        %v2038 = vadd.f32 %v2036, %v2037
        %2039 = vst.msk [vmem:[%s593] sm:$0xff] %vm2017, %v2038
        %s2040 = smul.u32 8, %s29
        %p2041 = scmp.lt.s32.totalorder %s2040, 31
        %s2042 = scalar_select %p2041, %s2040, 31
        %s2043 = smul.addr %s2042, 8
        %s2044 = scalar_lea.vmem %s12, %s2043
        %p2045 = scmp.lt.s32.totalorder %s29, 3
        %s2046 = scalar_select %p2045, %s29, 3
        %s2047 = smul.addr %s2046, 8
        %s2048 = scalar_lea.vmem %s13, %s2047
        // Predicated region
        $region93: #{embed_cvae_forward.1} parent=67 // pred_check
          %p2049 = pneg %p314
        $region94: #{embed_cvae_forward.1} parent=67 // pred_check_branch
          %2051 = sbr.rel (%p2049) target = $region96
        $region95: #{embed_cvae_forward.1} parent=67 // pred_region
          %s2052 = smul.u32 8, %s29
        $region96: #{embed_cvae_forward.1} parent=67 // pred_fallthru
          _
        // Predicated region
        $region97: #{embed_cvae_forward.1} parent=67 // pred_check
          %p2053 = pneg %p340
        $region98: #{embed_cvae_forward.1} parent=67 // pred_check_branch
          %2055 = sbr.rel (%p2053) target = $region100
        $region99: #{embed_cvae_forward.1} parent=67 // pred_region
          _
        $region100: #{embed_cvae_forward.1} parent=67 // pred_fallthru
          _
      $region68: #{embed_cvae_forward.1} parent=5 // pred_fallthru
        _
      %p2056 = scmp.le.s32.totalorder 2, %s24
      // Predicated region
      $region101: #{embed_cvae_forward.1} parent=5 // pred_check
        %p2057 = pneg %p2056
      $region102: #{embed_cvae_forward.1} parent=5 // pred_check_branch
        %2059 = sbr.rel (%p2057) target = $region104
      $region103: #{embed_cvae_forward.1} parent=5 // pred_region
        %s2060 = ssub.s32 %s24, 2
        // Predicated region
        $region105: #{embed_cvae_forward.1} parent=103 // pred_check
          %p2061 = pneg %p320
        $region106: #{embed_cvae_forward.1} parent=103 // pred_check_branch
          %2063 = sbr.rel (%p2061) target = $region108
        $region107: #{embed_cvae_forward.1} parent=103 // pred_region
          %s2064 = smul.u32 8, %s30
          %p2065 = scmp.lt.s32.totalorder %s2064, 31
          %s2066 = scalar_select %p2065, %s2064, 31
          %s2067 = smul.addr %s2066, 8
          %s2068 = scalar_lea.vmem %s12, %s2067
        $region108: #{embed_cvae_forward.1} parent=103 // pred_fallthru
          _
        // Predicated region
        $region109: #{embed_cvae_forward.1} parent=103 // pred_check
          %p2069 = pneg %p346
        $region110: #{embed_cvae_forward.1} parent=103 // pred_check_branch
          %2071 = sbr.rel (%p2069) target = $region112
        $region111: #{embed_cvae_forward.1} parent=103 // pred_region
          %p2072 = scmp.lt.s32.totalorder %s30, 3
          %s2073 = scalar_select %p2072, %s30, 3
          %s2074 = smul.addr %s2073, 8
          %s2075 = scalar_lea.vmem %s13, %s2074
        $region112: #{embed_cvae_forward.1} parent=103 // pred_fallthru
          _
      $region104: #{embed_cvae_forward.1} parent=5 // pred_fallthru
        _
    $region6: #{embed_cvae_forward.1} parent=1 // loop_footer
      %s28 = sadd.s32 1, %s24
    $region7: #{embed_cvae_forward.1} parent=1 // loop_footer_branch
      %23 = sbr.rel target = $region3
    $region8: #{embed_cvae_forward.1} parent=1 // loop_exit
      _
    %2076 = vsyncpa [#allocation3], 1
    %s2077 = scalar_lea.sflag [#allocation3], 1
    %2078 = vsyncpa %s2077, 1
    %2079 = vsyncpa [#allocation5], 1
    %2080 = vsyncpa [#allocation8], 1
    %2081 = vsyncpa [#allocation11], 1

</llo_original>
